<compile_context>
chip_gen: v7x
topology: tpu7x:2x2x1
jax: 0.10.0
libtpu: 0.0.40
codegen_flags: <defaults>
</compile_context>

<pallas_src>
import functools
import math

import jax
import jax.numpy as jnp
from jax import lax
from jax.experimental import pallas as pl
from jax.experimental.pallas import tpu as pltpu


def _round_up(x, m):
    return ((x + m - 1) // m) * m


def _pick_block(n_pad, candidates=(512, 256, 128)):
    for c in candidates:
        if n_pad % c == 0:
            return c
    return 128


# ----------------------------------------------------------------------------
# Contrastive kernel: tiled Gram matmul + online off-diagonal log-softmax.
# ----------------------------------------------------------------------------
def _contrastive_kernel(xr_ref, xc_ref, lr_ref, lc_ref,       # inputs
                        loss_ref, cnt_ref,                     # outputs
                        m_sc, l_sc, spos_sc, npos_sc,          # VMEM scratch
                        *, n_valid, block_rows, block_cols):
    i = pl.program_id(0)
    j = pl.program_id(1)
    neg_big = jnp.float32(-1e30)

    @pl.when(j == 0)
    def _init():
        m_sc[...] = jnp.full(m_sc.shape, neg_big, jnp.float32)
        l_sc[...] = jnp.zeros(l_sc.shape, jnp.float32)
        spos_sc[...] = jnp.zeros(spos_sc.shape, jnp.float32)
        npos_sc[...] = jnp.zeros(npos_sc.shape, jnp.float32)

    # Similarity tile; temperature already folded into the normalized rows.
    s = lax.dot_general(xr_ref[...], xc_ref[...],
                        (((1,), (1,)), ((), ())),
                        preferred_element_type=jnp.float32)          # (Tm, Tk)

    gr = i * block_rows + lax.broadcasted_iota(jnp.int32,
                                               (block_rows, block_cols), 0)
    gc = j * block_cols + lax.broadcasted_iota(jnp.int32,
                                               (block_rows, block_cols), 1)
    # valid (non-padded) column, excluding the diagonal (self-similarity)
    sampling = (gc < n_valid) & (gr != gc)

    s_m = jnp.where(sampling, s, neg_big)

    # online softmax stats
    m_prev = m_sc[...]
    m_new = jnp.maximum(m_prev, jnp.max(s_m, axis=1, keepdims=True))
    alpha = jnp.exp(m_prev - m_new)
    l_sc[...] = alpha * l_sc[...] + jnp.sum(jnp.exp(s_m - m_new),
                                            axis=1, keepdims=True)
    m_sc[...] = m_new

    # positive mask built in-kernel from the label vectors
    rvalid = (i * block_rows
              + lax.broadcasted_iota(jnp.int32, (block_rows, 1), 0)) < n_valid
    pos = (lr_ref[...] == lc_ref[...]) & sampling & rvalid            # (Tm, Tk)

    spos_sc[...] += jnp.sum(jnp.where(pos, s, 0.0), axis=1, keepdims=True)
    npos_sc[...] += jnp.sum(pos.astype(jnp.float32), axis=1, keepdims=True)

    @pl.when(j == pl.num_programs(1) - 1)
    def _finalize():
        logz = m_sc[...] + jnp.log(l_sc[...])                         # (Tm, 1)
        npos = npos_sc[...]
        # sum over positives of (-logp) = npos * logz - sum_pos(sim)
        contrib = jnp.where(npos > 0, npos * logz - spos_sc[...], 0.0)
        total = jnp.sum(contrib, axis=0, keepdims=True)               # (1, 1)
        cnt = jnp.sum(npos, axis=0, keepdims=True)                    # (1, 1)
        loss_ref[...] = jnp.broadcast_to(total, loss_ref.shape)
        cnt_ref[...] = jnp.broadcast_to(cnt, cnt_ref.shape)


def _run_contrastive(x, labels_flat, temperature, *,
                     gram_dtype=jnp.float32, block_rows=128):
    n, d = x.shape
    n_pad = _round_up(n, 128)
    d_pad = _round_up(d, 128)
    block_cols = _pick_block(n_pad)

    # Pad and pre-normalize (temperature folded in).  Padded rows are all-zero
    # and are masked out inside the kernel.
    x = jnp.pad(x.astype(jnp.float32), ((0, n_pad - n), (0, d_pad - d)))
    sq = jnp.sum(x * x, axis=-1, keepdims=True)
    inv = lax.rsqrt(jnp.maximum(sq, jnp.float32(1e-16)))
    x_hat = (x * (inv * jnp.float32(1.0 / math.sqrt(float(temperature))))
             ).astype(gram_dtype)

    lab = jnp.pad(labels_flat.astype(jnp.int32), (0, n_pad - n),
                  constant_values=-1)
    lab_row = lab.reshape(n_pad, 1)
    lab_col = lab.reshape(1, n_pad)

    grid_rows = n_pad // block_rows
    grid_cols = n_pad // block_cols

    kernel = functools.partial(_contrastive_kernel, n_valid=n,
                               block_rows=block_rows, block_cols=block_cols)

    out_shape = (jax.ShapeDtypeStruct((grid_rows, 1, 128), jnp.float32),
                 jax.ShapeDtypeStruct((grid_rows, 1, 128), jnp.float32))

    loss_parts, cnt_parts = pl.pallas_call(
        kernel,
        out_shape=out_shape,
        grid_spec=pltpu.PrefetchScalarGridSpec(
            num_scalar_prefetch=0,
            grid=(grid_rows, grid_cols),
            in_specs=[
                pl.BlockSpec((block_rows, d_pad), lambda i, j: (i, 0)),  # rows
                pl.BlockSpec((block_cols, d_pad), lambda i, j: (j, 0)),  # cols
                pl.BlockSpec((block_rows, 1), lambda i, j: (i, 0)),      # row labels
                pl.BlockSpec((1, block_cols), lambda i, j: (0, j)),      # col labels
            ],
            out_specs=[
                pl.BlockSpec((1, 1, 128), lambda i, j: (i, 0, 0)),
                pl.BlockSpec((1, 1, 128), lambda i, j: (i, 0, 0)),
            ],
            scratch_shapes=[pltpu.VMEM((block_rows, 1), jnp.float32)] * 4,
        ),
        compiler_params=pltpu.CompilerParams(
            dimension_semantics=("parallel", "arbitrary"),
            vmem_limit_bytes=32 * 1024 * 1024),
    )(x_hat, x_hat, lab_row, lab_col)

    total = jnp.sum(loss_parts[:, 0, 0])
    count = jnp.sum(cnt_parts[:, 0, 0])
    return total / jnp.maximum(count, 1.0)   # guard against zero positives


# ----------------------------------------------------------------------------
# Small single-shot kernels for the optional classification / KL terms.
# ----------------------------------------------------------------------------
def _cross_entropy_kernel(logits_ref, labels_ref, out_ref):
    """logits: (N, C); labels: (N, 1) int32; out: mean cross-entropy (1, 1)."""
    logits = logits_ref[...].astype(jnp.float32)
    labels = labels_ref[...]
    n, c = logits.shape
    m = jnp.max(logits, axis=1, keepdims=True)
    lse = jnp.log(jnp.sum(jnp.exp(logits - m), axis=1, keepdims=True)) + m
    col = lax.broadcasted_iota(jnp.int32, (n, c), 1)
    onehot = (col == labels).astype(jnp.float32)
    picked = jnp.sum(logits * onehot, axis=1, keepdims=True)
    out_ref[0, 0] = jnp.sum(lse - picked) / jnp.float32(n)


def _kl_kernel(mu_ref, logvar_ref, out_ref):
    """kl = (-(1 + logvar - mu^2 - exp(logvar)) / 2).sum(dim=1).mean()"""
    mu = mu_ref[...].astype(jnp.float32)
    logvar = logvar_ref[...].astype(jnp.float32)
    kl = -(1.0 + logvar - mu * mu - jnp.exp(logvar)) * 0.5
    out_ref[0, 0] = jnp.sum(kl) / jnp.float32(mu.shape[0])


_VMEM = pl.BlockSpec(memory_space=pltpu.MemorySpace.VMEM)
_SMEM_OUT = pl.BlockSpec(memory_space=pltpu.MemorySpace.SMEM)
_SCALAR_OUT = jax.ShapeDtypeStruct((1, 1), jnp.float32)


def _run_cross_entropy(predy, labels_flat):
    out = pl.pallas_call(
        _cross_entropy_kernel, out_shape=_SCALAR_OUT,
        in_specs=[_VMEM, _VMEM], out_specs=_SMEM_OUT,
    )(predy, labels_flat.reshape(-1, 1).astype(jnp.int32))
    return out[0, 0]


def _run_kl(mu, logvar):
    out = pl.pallas_call(
        _kl_kernel, out_shape=_SCALAR_OUT,
        in_specs=[_VMEM, _VMEM], out_specs=_SMEM_OUT,
    )(mu, logvar)
    return out[0, 0]


# ----------------------------------------------------------------------------
# Forward wrapper (glue: concatenation / label flattening stays in plain JAX)
# ----------------------------------------------------------------------------
def contrastive_loss_forward(embedding, labels=None, predy=None, mu=None,
                             logvar=None, *, temperature=0.5,
                             loss_mode='default', gram_dtype=jnp.float32):
    """JAX/Pallas equivalent of ContrastiveLoss.forward."""
    batch_size = embedding[0].shape[0]
    embedding_num = len(embedding)
    x = jnp.concatenate(list(embedding), axis=0)                    # (N, D)
    n = x.shape[0]
    if n % embedding_num != 0:
        raise ValueError('There are some errors happened in `embedding` from different views')

    if labels is None:
        # eye(batch).repeat(views, views)  <=>  label_i = i % batch
        labels_flat = jnp.arange(n, dtype=jnp.int32) % batch_size
        labels_for_ce = None
    else:
        lab = jnp.concatenate(list(labels), axis=0) if isinstance(labels, tuple) else labels
        labels_flat = lab.reshape(-1).astype(jnp.int32)
        labels_for_ce = labels_flat

    loss = {}
    loss['contrastive'] = _run_contrastive(x, labels_flat, temperature,
                                           gram_dtype=gram_dtype)

    if predy is not None and labels_for_ce is not None:
        if loss_mode == 'default':
            loss['classification'] = _run_cross_entropy(predy, labels_for_ce)
        else:
            # TODO(synk): 'focal_loss' and 'hardmining' modes (per-sample argsort /
            # top-k selection) not implemented as Pallas kernels.
            loss['classification'] = None
    else:
        loss['classification'] = None

    if mu is not None and logvar is not None:
        loss['kl'] = _run_kl(mu, logvar)
    else:
        loss['kl'] = None
    return loss


# ----------------------------------------------------------------------------
# Pure-JAX reference (for a correctness sanity check)
# ----------------------------------------------------------------------------
def _reference_forward(embedding, labels=None, predy=None, mu=None, logvar=None,
                       temperature=0.5):
    B = embedding[0].shape[0]
    E = len(embedding)
    x = jnp.concatenate(list(embedding), axis=0).astype(jnp.float32)
    N = x.shape[0]
    if labels is None:
        mask_pos = jnp.tile(jnp.eye(B, dtype=bool), (E, E))
        lab = None
    else:
        lab = jnp.concatenate(list(labels), 0) if isinstance(labels, tuple) else labels
        lab = lab.reshape(-1)
        mask_pos = lab[:, None] == lab[None, :]
    norm = jnp.linalg.norm(x, axis=1)
    cos = (x @ x.T) / jnp.maximum(norm[:, None] * norm[None, :], 1e-8)
    sim = cos / temperature
    off = ~jnp.eye(N, dtype=bool)
    logits = jax.nn.log_softmax(jnp.where(off, sim, -jnp.inf), axis=1)
    pos = mask_pos & off
    out = {'contrastive': -jnp.sum(jnp.where(pos, logits, 0.0)) / jnp.sum(pos)}
    if predy is not None and lab is not None:
        lse = jax.nn.logsumexp(predy.astype(jnp.float32), axis=1)
        picked = jnp.take_along_axis(predy.astype(jnp.float32),
                                     lab[:, None], axis=1)[:, 0]
        out['classification'] = jnp.mean(lse - picked)
    else:
        out['classification'] = None
    if mu is not None and logvar is not None:
        kl = -(1 + logvar - mu ** 2 - jnp.exp(logvar)) / 2
        out['kl'] = kl.sum(axis=1).mean()
    else:
        out['kl'] = None
    return out


# ----------------------------------------------------------------------------
if __name__ == "__main__":
    key = jax.random.PRNGKey(0)
    k1, k2, k3, k4, k5, k6, k7 = jax.random.split(key, 7)

    # --- small demo shapes -------------------------------------------------
    batch, views, dim, n_classes, latent = 4, 2, 32, 8, 16
    temperature = 0.5

    e1 = jax.random.normal(k1, (batch, dim), dtype=jnp.float32)
    e2 = jax.random.normal(k2, (batch, dim), dtype=jnp.float32)
    embedding = (e1, e2)
    labels = (jnp.arange(batch, dtype=jnp.int32) % n_classes,
              jnp.arange(batch, dtype=jnp.int32) % n_classes)
    predy = jax.random.normal(k3, (batch * views, n_classes), dtype=jnp.float32)
    mu = jax.random.normal(k4, (batch * views, latent), dtype=jnp.float32)
    logvar = 0.1 * jax.random.normal(k5, (batch * views, latent), dtype=jnp.float32)

    # Path 1: labels=None (default path of the module)
    out1 = contrastive_loss_forward(embedding, temperature=temperature)
    jax.block_until_ready(out1['contrastive'])

    # Path 2: labels + classification (default cross-entropy) + KL
    out2 = contrastive_loss_forward(embedding, labels=labels, predy=predy,
                                    mu=mu, logvar=logvar,
                                    temperature=temperature, loss_mode='default')
    jax.block_until_ready(out2['contrastive'])

    ref1 = _reference_forward(embedding, temperature=temperature)
    ref2 = _reference_forward(embedding, labels=labels, predy=predy,
                              mu=mu, logvar=logvar, temperature=temperature)
    assert jnp.allclose(out1['contrastive'], ref1['contrastive'], atol=1e-4, rtol=1e-4)
    assert jnp.allclose(out2['contrastive'], ref2['contrastive'], atol=1e-4, rtol=1e-4)
    assert jnp.allclose(out2['classification'], ref2['classification'], atol=1e-4, rtol=1e-4)
    assert jnp.allclose(out2['kl'], ref2['kl'], atol=1e-4, rtol=1e-4)

    # --- larger shapes: exercise multiple row/col tiles + padding ----------
    big_batch, big_dim = 96, 32
    b1 = jax.random.normal(k6, (big_batch, big_dim), dtype=jnp.float32)
    b2 = jax.random.normal(k7, (big_batch, big_dim), dtype=jnp.float32)
    lab1 = (jnp.arange(big_batch, dtype=jnp.int32) % 10).at[0].set(999)  # row w/o positives
    lab2 = jnp.arange(big_batch, dtype=jnp.int32) % 10
    big_embedding, big_labels = (b1, b2), (lab1, lab2)

    out3 = contrastive_loss_forward(big_embedding, labels=big_labels,
                                    temperature=temperature)
    ref3 = _reference_forward(big_embedding, labels=big_labels,
                              temperature=temperature)
    jax.block_until_ready(out3['contrastive'])
    assert jnp.allclose(out3['contrastive'], ref3['contrastive'], atol=1e-4, rtol=1e-4)

    # bf16 Gram-matmul path (v6e/v7x MXU throughput option) — loose tolerance
    out4 = contrastive_loss_forward(big_embedding, labels=big_labels,
                                    temperature=temperature,
                                    gram_dtype=jnp.bfloat16)
    jax.block_until_ready(out4['contrastive'])
    assert jnp.allclose(out4['contrastive'], ref3['contrastive'], atol=1e-1, rtol=1e-1)

    print("KERNEL_OK")
</pallas_src>

<mosaic_0001>
module attributes {stable_mosaic.version = 11 : i64} {
  func.func @_contrastive_kernel(%arg0: i32, %arg1: i32, %arg2: memref<128x128xf32, #tpu.memory_space<vmem>>, %arg3: memref<128x128xf32, #tpu.memory_space<vmem>>, %arg4: memref<128x1xi32, #tpu.memory_space<vmem>>, %arg5: memref<1x128xi32, #tpu.memory_space<vmem>>, %arg6: memref<1x1x128xf32, #tpu.memory_space<vmem>>, %arg7: memref<1x1x128xf32, #tpu.memory_space<vmem>>, %arg8: memref<128x1xf32, #tpu.memory_space<vmem>>, %arg9: memref<128x1xf32, #tpu.memory_space<vmem>>, %arg10: memref<128x1xf32, #tpu.memory_space<vmem>>, %arg11: memref<128x1xf32, #tpu.memory_space<vmem>>) attributes {dimension_semantics = [#tpu.dimension_semantics<parallel>, #tpu.dimension_semantics<arbitrary>], iteration_bounds = array<i64: 1, 1>, scalar_prefetch = 0 : i64, scratch_operands = 4 : i64, tpu.core_type = #tpu.core_type<tc>, window_params = [{transform_indices = @transform_0, window_bounds = array<i64: 128, 128>}, {transform_indices = @transform_1, window_bounds = array<i64: 128, 128>}, {transform_indices = @transform_2, window_bounds = array<i64: 128, 1>}, {transform_indices = @transform_3, window_bounds = array<i64: 1, 128>}, {transform_indices = @transform_4, window_bounds = array<i64: 1, 1, 128>}, {transform_indices = @transform_5, window_bounds = array<i64: 1, 1, 128>}]} {
    %c0_i32 = arith.constant 0 : i32
    %0 = arith.cmpi eq, %arg1, %c0_i32 : i32
    %1 = arith.extui %0 : i1 to i32
    %cst = arith.constant -1.000000e+30 : f32
    %c0_i32_0 = arith.constant 0 : i32
    %2 = arith.cmpi ne, %1, %c0_i32_0 : i32
    scf.if %2 {
      %67 = vector.broadcast %cst : f32 to vector<128x1xf32>
      %c0_36 = arith.constant 0 : index
      %c0_37 = arith.constant 0 : index
      %68 = vector.load %arg8[%c0_36, %c0_37] : memref<128x1xf32, #tpu.memory_space<vmem>>, vector<128x1xf32>
      tpu.vector_store %arg8[%c0_36, %c0_37], %67 {strides = array<i32>} : memref<128x1xf32, #tpu.memory_space<vmem>>, vector<128x1xf32>,
      %cst_38 = arith.constant 0.000000e+00 : f32
      %69 = vector.broadcast %cst_38 : f32 to vector<128x1xf32>
      %c0_39 = arith.constant 0 : index
      %c0_40 = arith.constant 0 : index
      %70 = vector.load %arg9[%c0_39, %c0_40] : memref<128x1xf32, #tpu.memory_space<vmem>>, vector<128x1xf32>
      tpu.vector_store %arg9[%c0_39, %c0_40], %69 {strides = array<i32>} : memref<128x1xf32, #tpu.memory_space<vmem>>, vector<128x1xf32>,
      %cst_41 = arith.constant 0.000000e+00 : f32
      %71 = vector.broadcast %cst_41 : f32 to vector<128x1xf32>
      %c0_42 = arith.constant 0 : index
      %c0_43 = arith.constant 0 : index
      %72 = vector.load %arg10[%c0_42, %c0_43] : memref<128x1xf32, #tpu.memory_space<vmem>>, vector<128x1xf32>
      tpu.vector_store %arg10[%c0_42, %c0_43], %71 {strides = array<i32>} : memref<128x1xf32, #tpu.memory_space<vmem>>, vector<128x1xf32>,
      %cst_44 = arith.constant 0.000000e+00 : f32
      %73 = vector.broadcast %cst_44 : f32 to vector<128x1xf32>
      %c0_45 = arith.constant 0 : index
      %c0_46 = arith.constant 0 : index
      %74 = vector.load %arg11[%c0_45, %c0_46] : memref<128x1xf32, #tpu.memory_space<vmem>>, vector<128x1xf32>
      tpu.vector_store %arg11[%c0_45, %c0_46], %73 {strides = array<i32>} : memref<128x1xf32, #tpu.memory_space<vmem>>, vector<128x1xf32>,
    } else {
    }
    %c0 = arith.constant 0 : index
    %c0_1 = arith.constant 0 : index
    %3 = vector.load %arg2[%c0, %c0_1] : memref<128x128xf32, #tpu.memory_space<vmem>>, vector<128x128xf32>
    %c0_2 = arith.constant 0 : index
    %c0_3 = arith.constant 0 : index
    %4 = vector.load %arg3[%c0_2, %c0_3] : memref<128x128xf32, #tpu.memory_space<vmem>>, vector<128x128xf32>
    %cst_4 = arith.constant dense<0.000000e+00> : vector<128x128xf32>
    %5 = tpu.matmul %3, %4, %cst_4 {dimension_numbers = #tpu.dot_dimension_numbers<[1], [1], [0], [0], [0, 0, 1, 0], [], []>} : vector<128x128xf32>, vector<128x128xf32>, vector<128x128xf32> -> vector<128x128xf32>
    %c128_i32 = arith.constant 128 : i32
    %6 = arith.muli %arg0, %c128_i32 : i32
    %7 = tpu.iota {dimensions = array<i32: 0>} : vector<128x128xi32>
    %8 = vector.broadcast %6 : i32 to vector<128x128xi32>
    %9 = arith.addi %8, %7 : vector<128x128xi32>
    %c128_i32_5 = arith.constant 128 : i32
    %10 = arith.muli %arg1, %c128_i32_5 : i32
    %11 = tpu.iota {dimensions = array<i32: 1>} : vector<128x128xi32>
    %12 = vector.broadcast %10 : i32 to vector<128x128xi32>
    %13 = arith.addi %12, %11 : vector<128x128xi32>
    %c8_i32 = arith.constant 8 : i32
    %14 = vector.broadcast %c8_i32 : i32 to vector<128x128xi32>
    %15 = arith.cmpi slt, %13, %14 : vector<128x128xi32>
    %16 = arith.cmpi ne, %9, %13 : vector<128x128xi32>
    %17 = arith.andi %15, %16 : vector<128x128xi1>
    %cst_6 = arith.constant -1.000000e+30 : f32
    %18 = vector.broadcast %cst_6 : f32 to vector<128x128xf32>
    %19 = arith.select %17, %5, %18 : vector<128x128xi1>, vector<128x128xf32>
    %c0_7 = arith.constant 0 : index
    %c0_8 = arith.constant 0 : index
    %20 = vector.load %arg8[%c0_7, %c0_8] : memref<128x1xf32, #tpu.memory_space<vmem>>, vector<128x1xf32>
    %cst_9 = arith.constant dense<0xFF800000> : vector<128xf32>
    %21 = vector.multi_reduction <maximumf>, %19, %cst_9 [1] : vector<128x128xf32> to vector<128xf32>
    %22 = vector.shape_cast %21 : vector<128xf32> to vector<128x1xf32>
    %23 = arith.maximumf %20, %22 : vector<128x1xf32>
    %24 = arith.subf %20, %23 : vector<128x1xf32>
    %25 = math.exp %24 : vector<128x1xf32>
    %c0_10 = arith.constant 0 : index
    %c0_11 = arith.constant 0 : index
    %26 = vector.load %arg9[%c0_10, %c0_11] : memref<128x1xf32, #tpu.memory_space<vmem>>, vector<128x1xf32>
    %27 = arith.mulf %25, %26 : vector<128x1xf32>
    %28 = vector.broadcast %23 : vector<128x1xf32> to vector<128x128xf32>
    %29 = arith.subf %19, %28 : vector<128x128xf32>
    %30 = math.exp %29 : vector<128x128xf32>
    %cst_12 = arith.constant dense<0.000000e+00> : vector<128xf32>
    %31 = vector.multi_reduction <add>, %30, %cst_12 [1] : vector<128x128xf32> to vector<128xf32>
    %32 = vector.shape_cast %31 : vector<128xf32> to vector<128x1xf32>
    %33 = arith.addf %27, %32 : vector<128x1xf32>
    %c0_13 = arith.constant 0 : index
    %c0_14 = arith.constant 0 : index
    %34 = vector.load %arg9[%c0_13, %c0_14] : memref<128x1xf32, #tpu.memory_space<vmem>>, vector<128x1xf32>
    tpu.vector_store %arg9[%c0_13, %c0_14], %33 {strides = array<i32>} : memref<128x1xf32, #tpu.memory_space<vmem>>, vector<128x1xf32>,
    %c0_15 = arith.constant 0 : index
    %c0_16 = arith.constant 0 : index
    %35 = vector.load %arg8[%c0_15, %c0_16] : memref<128x1xf32, #tpu.memory_space<vmem>>, vector<128x1xf32>
    tpu.vector_store %arg8[%c0_15, %c0_16], %23 {strides = array<i32>} : memref<128x1xf32, #tpu.memory_space<vmem>>, vector<128x1xf32>,
    %c128_i32_17 = arith.constant 128 : i32
    %36 = arith.muli %arg0, %c128_i32_17 : i32
    %37 = tpu.iota {dimensions = array<i32: 0>} : vector<128x1xi32>
    %38 = vector.broadcast %36 : i32 to vector<128x1xi32>
    %39 = arith.addi %38, %37 : vector<128x1xi32>
    %c8_i32_18 = arith.constant 8 : i32
    %40 = vector.broadcast %c8_i32_18 : i32 to vector<128x1xi32>
    %41 = arith.cmpi slt, %39, %40 : vector<128x1xi32>
    %c0_19 = arith.constant 0 : index
    %c0_20 = arith.constant 0 : index
    %42 = vector.load %arg4[%c0_19, %c0_20] : memref<128x1xi32, #tpu.memory_space<vmem>>, vector<128x1xi32>
    %c0_21 = arith.constant 0 : index
    %c0_22 = arith.constant 0 : index
    %43 = vector.load %arg5[%c0_21, %c0_22] : memref<1x128xi32, #tpu.memory_space<vmem>>, vector<1x128xi32>
    %44 = vector.broadcast %42 : vector<128x1xi32> to vector<128x128xi32>
    %45 = vector.broadcast %43 : vector<1x128xi32> to vector<128x128xi32>
    %46 = arith.cmpi eq, %44, %45 : vector<128x128xi32>
    %47 = arith.andi %46, %17 : vector<128x128xi1>
    %48 = vector.broadcast %41 : vector<128x1xi1> to vector<128x128xi1>
    %49 = arith.andi %47, %48 : vector<128x128xi1>
    %c0_23 = arith.constant 0 : index
    %c0_24 = arith.constant 0 : index
    %50 = vector.load %arg10[%c0_23, %c0_24] : memref<128x1xf32, #tpu.memory_space<vmem>>, vector<128x1xf32>
    %cst_25 = arith.constant 0.000000e+00 : f32
    %51 = vector.broadcast %cst_25 : f32 to vector<128x128xf32>
    %52 = arith.select %49, %5, %51 : vector<128x128xi1>, vector<128x128xf32>
    %cst_26 = arith.constant dense<0.000000e+00> : vector<128xf32>
    %53 = vector.multi_reduction <add>, %52, %cst_26 [1] : vector<128x128xf32> to vector<128xf32>
    %54 = vector.shape_cast %53 : vector<128xf32> to vector<128x1xf32>
    %55 = arith.addf %50, %54 : vector<128x1xf32>
    %c0_27 = arith.constant 0 : index
    %c0_28 = arith.constant 0 : index
    %56 = vector.load %arg10[%c0_27, %c0_28] : memref<128x1xf32, #tpu.memory_space<vmem>>, vector<128x1xf32>
    tpu.vector_store %arg10[%c0_27, %c0_28], %55 {strides = array<i32>} : memref<128x1xf32, #tpu.memory_space<vmem>>, vector<128x1xf32>,
    %c0_29 = arith.constant 0 : index
    %c0_30 = arith.constant 0 : index
    %57 = vector.load %arg11[%c0_29, %c0_30] : memref<128x1xf32, #tpu.memory_space<vmem>>, vector<128x1xf32>
    %58 = arith.extui %49 : vector<128x128xi1> to vector<128x128xi32>
    %59 = arith.sitofp %58 : vector<128x128xi32> to vector<128x128xf32>
    %cst_31 = arith.constant dense<0.000000e+00> : vector<128xf32>
    %60 = vector.multi_reduction <add>, %59, %cst_31 [1] : vector<128x128xf32> to vector<128xf32>
    %61 = vector.shape_cast %60 : vector<128xf32> to vector<128x1xf32>
    %62 = arith.addf %57, %61 : vector<128x1xf32>
    %c0_32 = arith.constant 0 : index
    %c0_33 = arith.constant 0 : index
    %63 = vector.load %arg11[%c0_32, %c0_33] : memref<128x1xf32, #tpu.memory_space<vmem>>, vector<128x1xf32>
    tpu.vector_store %arg11[%c0_32, %c0_33], %62 {strides = array<i32>} : memref<128x1xf32, #tpu.memory_space<vmem>>, vector<128x1xf32>,
    %c0_i32_34 = arith.constant 0 : i32
    %64 = arith.cmpi eq, %arg1, %c0_i32_34 : i32
    %65 = arith.extui %64 : i1 to i32
    %c0_i32_35 = arith.constant 0 : i32
    %66 = arith.cmpi ne, %65, %c0_i32_35 : i32
    scf.if %66 {
      %c0_36 = arith.constant 0 : index
      %c0_37 = arith.constant 0 : index
      %67 = vector.load %arg8[%c0_36, %c0_37] : memref<128x1xf32, #tpu.memory_space<vmem>>, vector<128x1xf32>
      %c0_38 = arith.constant 0 : index
      %c0_39 = arith.constant 0 : index
      %68 = vector.load %arg9[%c0_38, %c0_39] : memref<128x1xf32, #tpu.memory_space<vmem>>, vector<128x1xf32>
      %69 = math.log %68 : vector<128x1xf32>
      %70 = arith.addf %67, %69 : vector<128x1xf32>
      %c0_40 = arith.constant 0 : index
      %c0_41 = arith.constant 0 : index
      %71 = vector.load %arg11[%c0_40, %c0_41] : memref<128x1xf32, #tpu.memory_space<vmem>>, vector<128x1xf32>
      %cst_42 = arith.constant 0.000000e+00 : f32
      %72 = vector.broadcast %cst_42 : f32 to vector<128x1xf32>
      %73 = arith.cmpf ogt, %71, %72 : vector<128x1xf32>
      %74 = arith.mulf %71, %70 : vector<128x1xf32>
      %c0_43 = arith.constant 0 : index
      %c0_44 = arith.constant 0 : index
      %75 = vector.load %arg10[%c0_43, %c0_44] : memref<128x1xf32, #tpu.memory_space<vmem>>, vector<128x1xf32>
      %76 = arith.subf %74, %75 : vector<128x1xf32>
      %cst_45 = arith.constant 0.000000e+00 : f32
      %77 = vector.broadcast %cst_45 : f32 to vector<128x1xf32>
      %78 = arith.select %73, %76, %77 : vector<128x1xi1>, vector<128x1xf32>
      %cst_46 = arith.constant dense<0.000000e+00> : vector<1xf32>
      %79 = vector.multi_reduction <add>, %78, %cst_46 [0] : vector<128x1xf32> to vector<1xf32>
      %80 = vector.shape_cast %79 : vector<1xf32> to vector<1x1xf32>
      %cst_47 = arith.constant dense<0.000000e+00> : vector<1xf32>
      %81 = vector.multi_reduction <add>, %71, %cst_47 [0] : vector<128x1xf32> to vector<1xf32>
      %82 = vector.shape_cast %81 : vector<1xf32> to vector<1x1xf32>
      %83 = vector.shape_cast %80 : vector<1x1xf32> to vector<1x1x1xf32>
      %84 = vector.broadcast %83 : vector<1x1x1xf32> to vector<1x1x128xf32>
      %c0_48 = arith.constant 0 : index
      %c0_49 = arith.constant 0 : index
      %c0_50 = arith.constant 0 : index
      %85 = vector.load %arg6[%c0_48, %c0_49, %c0_50] : memref<1x1x128xf32, #tpu.memory_space<vmem>>, vector<1x1x128xf32>
      tpu.vector_store %arg6[%c0_48, %c0_49, %c0_50], %84 {strides = array<i32>} : memref<1x1x128xf32, #tpu.memory_space<vmem>>, vector<1x1x128xf32>,
      %86 = vector.shape_cast %82 : vector<1x1xf32> to vector<1x1x1xf32>
      %87 = vector.broadcast %86 : vector<1x1x1xf32> to vector<1x1x128xf32>
      %c0_51 = arith.constant 0 : index
      %c0_52 = arith.constant 0 : index
      %c0_53 = arith.constant 0 : index
      %88 = vector.load %arg7[%c0_51, %c0_52, %c0_53] : memref<1x1x128xf32, #tpu.memory_space<vmem>>, vector<1x1x128xf32>
      tpu.vector_store %arg7[%c0_51, %c0_52, %c0_53], %87 {strides = array<i32>} : memref<1x1x128xf32, #tpu.memory_space<vmem>>, vector<1x1x128xf32>,
    } else {
    }
    return
  }
  func.func @transform_0(%arg0: i32, %arg1: i32) -> (i32, i32) {
    %c0_i32 = arith.constant 0 : i32
    %c0_i32_0 = arith.constant 0 : i32
    return %arg0, %c0_i32 : i32, i32
  }
  func.func @transform_1(%arg0: i32, %arg1: i32) -> (i32, i32) {
    %c0_i32 = arith.constant 0 : i32
    %c0_i32_0 = arith.constant 0 : i32
    return %arg1, %c0_i32 : i32, i32
  }
  func.func @transform_2(%arg0: i32, %arg1: i32) -> (i32, i32) {
    %c0_i32 = arith.constant 0 : i32
    %c0_i32_0 = arith.constant 0 : i32
    return %arg0, %c0_i32 : i32, i32
  }
  func.func @transform_3(%arg0: i32, %arg1: i32) -> (i32, i32) {
    %c0_i32 = arith.constant 0 : i32
    %c0_i32_0 = arith.constant 0 : i32
    return %c0_i32, %arg1 : i32, i32
  }
  func.func @transform_4(%arg0: i32, %arg1: i32) -> (i32, i32, i32) {
    %c0_i32 = arith.constant 0 : i32
    %c0_i32_0 = arith.constant 0 : i32
    %c0_i32_1 = arith.constant 0 : i32
    return %arg0, %c0_i32, %c0_i32_0 : i32, i32, i32
  }
  func.func @transform_5(%arg0: i32, %arg1: i32) -> (i32, i32, i32) {
    %c0_i32 = arith.constant 0 : i32
    %c0_i32_0 = arith.constant 0 : i32
    %c0_i32_1 = arith.constant 0 : i32
    return %arg0, %c0_i32, %c0_i32_0 : i32, i32, i32
  }
}

</mosaic_0001>

<llo_original>
// kernel: tpu_custom_call.1
$region0: #{tpu_custom_call.1}
  #allocation0 [shape = 'u32[]', space=smem, size = 0x4, offset = 0x4, fixed_abs, tag = 'smem constant byte address 0x4 - core index']
  #allocation1 [shape = 'u32[144,128]{1,0:T(1,128)}', space=vmem, size = 0x12000, scoped, tag = 'internal scratch']
  #allocation2 [shape = 'f32[128,1]{1,0:T(8,128)}', space=vmem, size = 0x10000, scoped, tag = 'scratch operand']
  #allocation3 [shape = 'f32[128,1]{1,0:T(8,128)}', space=vmem, size = 0x10000, scoped, tag = 'scratch operand']
  #allocation4 [shape = 'f32[128,1]{1,0:T(8,128)}', space=vmem, size = 0x10000, scoped, tag = 'scratch operand']
  #allocation5 [shape = 'f32[128,1]{1,0:T(8,128)}', space=vmem, size = 0x10000, scoped, tag = 'scratch operand']
  %s0 = inlined_call_operand.vmem [shape: f32[128,128], index: 0, kind: input, shape index: {}]
  %s1 = inlined_call_operand.hbm [shape: f32[128,128], index: 1, kind: input, shape index: {}]
  %s2 = inlined_call_operand.vmem [shape: s32[128,1], index: 2, kind: input, shape index: {}]
  %s3 = inlined_call_operand.vmem [shape: s32[1,128], index: 3, kind: input, shape index: {}]
  %s4 = inlined_call_operand.hbm [shape: f32[1,1,128], index: 4, kind: output, shape index: {0}]
  %s5 = inlined_call_operand.hbm [shape: f32[1,1,128], index: 5, kind: output, shape index: {1}]
  %6 = xla_tuple %s4, %s5
  %s7 = sld [smem:[#allocation0]]
  $region46: #{tpu_custom_call.1} parent=0
    _
  %s9 = ssub.s32 1, %s7
  %s10 = scalar_select 0, %s9, %s7
  $region1: #{tpu_custom_call.1} parent=0
    #allocation6 [shape = 'u8[65536]{0}', space=vmem, size = 0x10000, scoped, tag = 'input window, operand 1, single buffered']
    #allocation7 [shape = 's32[1]{0}', space=sflag, size = 0x4, scoped, tag = 'scoped memory for tpu_custom_call.1']
    #allocation8 [shape = 's32[1]{0}', space=sflag, size = 0x4, scoped, tag = 'scoped memory for tpu_custom_call.1']
    #allocation9 [shape = 'u8[512]{0}', space=vmem, size = 0x400, scoped, tag = 'output window, operand 0, single buffered']
    #allocation10 [shape = 'u8[512]{0}', space=vmem, size = 0x400, scoped, tag = 'output window, operand 1, single buffered']
    #allocation11 [shape = 's32[1]{0}', space=sflag, size = 0x4, scoped, tag = 'scoped memory for tpu_custom_call.1']
    %11 = vsyncpa [#allocation7], 0
    %12 = vsyncpa [#allocation8], 0
    %13 = vsyncpa [#allocation11], 0
    // Predicated region
    $region2: #{tpu_custom_call.1} parent=1 // pred_check
      _
    $region3: #{tpu_custom_call.1} parent=1 // pred_check_branch
      %15 = sbr.rel (0) target = $region5
    $region4: #{tpu_custom_call.1} parent=1 // pred_region
      _
    $region5: #{tpu_custom_call.1} parent=1 // pred_fallthru
      _
    // Predicated region
    $region6: #{tpu_custom_call.1} parent=1 // pred_check
      _
    $region7: #{tpu_custom_call.1} parent=1 // pred_check_branch
      %17 = sbr.rel (0) target = $region9
    $region8: #{tpu_custom_call.1} parent=1 // pred_region
      %s19 = ssub.s32 2048, 2048
      %20 = vsyncadd [#allocation7], %s19
      %s21 = sshll.u32 [#allocation6], 4
      %s22 = int_to_ptr.vmem [resolvable:$true] %s21
      %27 = dma.hbm_to_vmem [thread:$0]  %s1, 2048, %s22, [#allocation7], 128, 128, 8
    $region9: #{tpu_custom_call.1} parent=1 // pred_fallthru
      _
    // Predicated region
    $region10: #{tpu_custom_call.1} parent=1 // pred_check
      _
    $region11: #{tpu_custom_call.1} parent=1 // pred_check_branch
      %29 = sbr.rel (0) target = $region13
    $region12: #{tpu_custom_call.1} parent=1 // pred_region
      _
    $region13: #{tpu_custom_call.1} parent=1 // pred_fallthru
      _
    // Predicated region
    $region14: #{tpu_custom_call.1} parent=1 // pred_check
      _
    $region15: #{tpu_custom_call.1} parent=1 // pred_check_branch
      %31 = sbr.rel (0) target = $region17
    $region16: #{tpu_custom_call.1} parent=1 // pred_region
      _
    $region17: #{tpu_custom_call.1} parent=1 // pred_fallthru
      _
    // Predicated region
    $region18: #{tpu_custom_call.1} parent=1 // pred_check
      _
    $region19: #{tpu_custom_call.1} parent=1 // pred_check_branch
      %33 = sbr.rel (0) target = $region21
    $region20: #{tpu_custom_call.1} parent=1 // pred_region
      %34 = dma.done [#allocation7], 2048
    $region21: #{tpu_custom_call.1} parent=1 // pred_fallthru
      _
    %p35 = scmp.eq.s32.totalorder 0, 0
    // Predicated region
    $region22: #{tpu_custom_call.1} parent=1 // pred_check
      %p36 = pneg %p35
    $region23: #{tpu_custom_call.1} parent=1 // pred_check_branch
      %38 = sbr.rel (%p36) target = $region25
    $region24: #{tpu_custom_call.1} parent=1 // pred_region
      %vm39 = vcmask 7168
      %40 = vst.msk [vmem:[#allocation2] sm:$0xff] %vm39, -1e+30
      %41 = vst.msk [vmem:[#allocation2 + $0x8] sm:$0xff] %vm39, -1e+30
      %42 = vst.msk [vmem:[#allocation2 + $0x10] sm:$0xff] %vm39, -1e+30
      %43 = vst.msk [vmem:[#allocation2 + $0x18] sm:$0xff] %vm39, -1e+30
      %44 = vst.msk [vmem:[#allocation2 + $0x20] sm:$0xff] %vm39, -1e+30
      %45 = vst.msk [vmem:[#allocation2 + $0x28] sm:$0xff] %vm39, -1e+30
      %46 = vst.msk [vmem:[#allocation2 + $0x30] sm:$0xff] %vm39, -1e+30
      %47 = vst.msk [vmem:[#allocation2 + $0x38] sm:$0xff] %vm39, -1e+30
      %48 = vst.msk [vmem:[#allocation2 + $0x40] sm:$0xff] %vm39, -1e+30
      %49 = vst.msk [vmem:[#allocation2 + $0x48] sm:$0xff] %vm39, -1e+30
      %50 = vst.msk [vmem:[#allocation2 + $0x50] sm:$0xff] %vm39, -1e+30
      %51 = vst.msk [vmem:[#allocation2 + $0x58] sm:$0xff] %vm39, -1e+30
      %52 = vst.msk [vmem:[#allocation2 + $0x60] sm:$0xff] %vm39, -1e+30
      %53 = vst.msk [vmem:[#allocation2 + $0x68] sm:$0xff] %vm39, -1e+30
      %54 = vst.msk [vmem:[#allocation2 + $0x70] sm:$0xff] %vm39, -1e+30
      %55 = vst.msk [vmem:[#allocation2 + $0x78] sm:$0xff] %vm39, -1e+30
      %56 = vst.msk [vmem:[#allocation3] sm:$0xff] %vm39, 0.0
      %57 = vst.msk [vmem:[#allocation3 + $0x8] sm:$0xff] %vm39, 0.0
      %58 = vst.msk [vmem:[#allocation3 + $0x10] sm:$0xff] %vm39, 0.0
      %59 = vst.msk [vmem:[#allocation3 + $0x18] sm:$0xff] %vm39, 0.0
      %60 = vst.msk [vmem:[#allocation3 + $0x20] sm:$0xff] %vm39, 0.0
      %61 = vst.msk [vmem:[#allocation3 + $0x28] sm:$0xff] %vm39, 0.0
      %62 = vst.msk [vmem:[#allocation3 + $0x30] sm:$0xff] %vm39, 0.0
      %63 = vst.msk [vmem:[#allocation3 + $0x38] sm:$0xff] %vm39, 0.0
      %64 = vst.msk [vmem:[#allocation3 + $0x40] sm:$0xff] %vm39, 0.0
      %65 = vst.msk [vmem:[#allocation3 + $0x48] sm:$0xff] %vm39, 0.0
      %66 = vst.msk [vmem:[#allocation3 + $0x50] sm:$0xff] %vm39, 0.0
      %67 = vst.msk [vmem:[#allocation3 + $0x58] sm:$0xff] %vm39, 0.0
      %68 = vst.msk [vmem:[#allocation3 + $0x60] sm:$0xff] %vm39, 0.0
      %69 = vst.msk [vmem:[#allocation3 + $0x68] sm:$0xff] %vm39, 0.0
      %70 = vst.msk [vmem:[#allocation3 + $0x70] sm:$0xff] %vm39, 0.0
      %71 = vst.msk [vmem:[#allocation3 + $0x78] sm:$0xff] %vm39, 0.0
      %72 = vst.msk [vmem:[#allocation4] sm:$0xff] %vm39, 0.0
      %73 = vst.msk [vmem:[#allocation4 + $0x8] sm:$0xff] %vm39, 0.0
      %74 = vst.msk [vmem:[#allocation4 + $0x10] sm:$0xff] %vm39, 0.0
      %75 = vst.msk [vmem:[#allocation4 + $0x18] sm:$0xff] %vm39, 0.0
      %76 = vst.msk [vmem:[#allocation4 + $0x20] sm:$0xff] %vm39, 0.0
      %77 = vst.msk [vmem:[#allocation4 + $0x28] sm:$0xff] %vm39, 0.0
      %78 = vst.msk [vmem:[#allocation4 + $0x30] sm:$0xff] %vm39, 0.0
      %79 = vst.msk [vmem:[#allocation4 + $0x38] sm:$0xff] %vm39, 0.0
      %80 = vst.msk [vmem:[#allocation4 + $0x40] sm:$0xff] %vm39, 0.0
      %81 = vst.msk [vmem:[#allocation4 + $0x48] sm:$0xff] %vm39, 0.0
      %82 = vst.msk [vmem:[#allocation4 + $0x50] sm:$0xff] %vm39, 0.0
      %83 = vst.msk [vmem:[#allocation4 + $0x58] sm:$0xff] %vm39, 0.0
      %84 = vst.msk [vmem:[#allocation4 + $0x60] sm:$0xff] %vm39, 0.0
      %85 = vst.msk [vmem:[#allocation4 + $0x68] sm:$0xff] %vm39, 0.0
      %86 = vst.msk [vmem:[#allocation4 + $0x70] sm:$0xff] %vm39, 0.0
      %87 = vst.msk [vmem:[#allocation4 + $0x78] sm:$0xff] %vm39, 0.0
      %88 = vst.msk [vmem:[#allocation5] sm:$0xff] %vm39, 0.0
      %89 = vst.msk [vmem:[#allocation5 + $0x8] sm:$0xff] %vm39, 0.0
      %90 = vst.msk [vmem:[#allocation5 + $0x10] sm:$0xff] %vm39, 0.0
      %91 = vst.msk [vmem:[#allocation5 + $0x18] sm:$0xff] %vm39, 0.0
      %92 = vst.msk [vmem:[#allocation5 + $0x20] sm:$0xff] %vm39, 0.0
      %93 = vst.msk [vmem:[#allocation5 + $0x28] sm:$0xff] %vm39, 0.0
      %94 = vst.msk [vmem:[#allocation5 + $0x30] sm:$0xff] %vm39, 0.0
      %95 = vst.msk [vmem:[#allocation5 + $0x38] sm:$0xff] %vm39, 0.0
      %96 = vst.msk [vmem:[#allocation5 + $0x40] sm:$0xff] %vm39, 0.0
      %97 = vst.msk [vmem:[#allocation5 + $0x48] sm:$0xff] %vm39, 0.0
      %98 = vst.msk [vmem:[#allocation5 + $0x50] sm:$0xff] %vm39, 0.0
      %99 = vst.msk [vmem:[#allocation5 + $0x58] sm:$0xff] %vm39, 0.0
      %100 = vst.msk [vmem:[#allocation5 + $0x60] sm:$0xff] %vm39, 0.0
      %101 = vst.msk [vmem:[#allocation5 + $0x68] sm:$0xff] %vm39, 0.0
      %102 = vst.msk [vmem:[#allocation5 + $0x70] sm:$0xff] %vm39, 0.0
      %103 = vst.msk [vmem:[#allocation5 + $0x78] sm:$0xff] %vm39, 0.0
    $region25: #{tpu_custom_call.1} parent=1 // pred_fallthru
      _
    %v104 = vld [vmem:[%s0] sm:$0xff]
    %v105 = vld [vmem:[%s0 + $0x8] sm:$0xff]
    %v106 = vld [vmem:[%s0 + $0x10] sm:$0xff]
    %v107 = vld [vmem:[%s0 + $0x18] sm:$0xff]
    %v108 = vld [vmem:[%s0 + $0x20] sm:$0xff]
    %v109 = vld [vmem:[%s0 + $0x28] sm:$0xff]
    %v110 = vld [vmem:[%s0 + $0x30] sm:$0xff]
    %v111 = vld [vmem:[%s0 + $0x38] sm:$0xff]
    %v112 = vld [vmem:[%s0 + $0x40] sm:$0xff]
    %v113 = vld [vmem:[%s0 + $0x48] sm:$0xff]
    %v114 = vld [vmem:[%s0 + $0x50] sm:$0xff]
    %v115 = vld [vmem:[%s0 + $0x58] sm:$0xff]
    %v116 = vld [vmem:[%s0 + $0x60] sm:$0xff]
    %v117 = vld [vmem:[%s0 + $0x68] sm:$0xff]
    %v118 = vld [vmem:[%s0 + $0x70] sm:$0xff]
    %v119 = vld [vmem:[%s0 + $0x78] sm:$0xff]
    %v120 = vld [vmem:[#allocation6] sm:$0xff]
    %v121 = vld [vmem:[#allocation6 + $0x8] sm:$0xff]
    %v122 = vld [vmem:[#allocation6 + $0x10] sm:$0xff]
    %v123 = vld [vmem:[#allocation6 + $0x18] sm:$0xff]
    %v124 = vld [vmem:[#allocation6 + $0x20] sm:$0xff]
    %v125 = vld [vmem:[#allocation6 + $0x28] sm:$0xff]
    %v126 = vld [vmem:[#allocation6 + $0x30] sm:$0xff]
    %v127 = vld [vmem:[#allocation6 + $0x38] sm:$0xff]
    %v128 = vld [vmem:[#allocation6 + $0x40] sm:$0xff]
    %v129 = vld [vmem:[#allocation6 + $0x48] sm:$0xff]
    %v130 = vld [vmem:[#allocation6 + $0x50] sm:$0xff]
    %v131 = vld [vmem:[#allocation6 + $0x58] sm:$0xff]
    %v132 = vld [vmem:[#allocation6 + $0x60] sm:$0xff]
    %v133 = vld [vmem:[#allocation6 + $0x68] sm:$0xff]
    %v134 = vld [vmem:[#allocation6 + $0x70] sm:$0xff]
    %v135 = vld [vmem:[#allocation6 + $0x78] sm:$0xff]
    %136 = vmatprep.subr.mxu0 0.0
    %137 = vmatpush1.xpose.msra.mxu0 %v120
    %138 = vmatprep.subr.mxu0 0.0
    %139 = vmatpush1.xpose.msra.mxu0 %v121
    %140 = vmatprep.subr.mxu0 0.0
    %141 = vmatpush1.xpose.msra.mxu0 %v122
    %142 = vmatprep.subr.mxu0 0.0
    %143 = vmatpush1.xpose.msra.mxu0 %v123
    %144 = vmatprep.subr.mxu0 0.0
    %145 = vmatpush1.xpose.msra.mxu0 %v124
    %146 = vmatprep.subr.mxu0 0.0
    %147 = vmatpush1.xpose.msra.mxu0 %v125
    %148 = vmatprep.subr.mxu0 0.0
    %149 = vmatpush1.xpose.msra.mxu0 %v126
    %150 = vmatprep.subr.mxu0 0.0
    %151 = vmatpush1.xpose.msra.mxu0 %v127
    %152 = vmatprep.subr.mxu0 0.0
    %153 = vmatpush1.xpose.msra.mxu0 %v128
    %154 = vmatprep.subr.mxu0 0.0
    %155 = vmatpush1.xpose.msra.mxu0 %v129
    %156 = vmatprep.subr.mxu0 0.0
    %157 = vmatpush1.xpose.msra.mxu0 %v130
    %158 = vmatprep.subr.mxu0 0.0
    %159 = vmatpush1.xpose.msra.mxu0 %v131
    %160 = vmatprep.subr.mxu0 0.0
    %161 = vmatpush1.xpose.msra.mxu0 %v132
    %162 = vmatprep.subr.mxu0 0.0
    %163 = vmatpush1.xpose.msra.mxu0 %v133
    %164 = vmatprep.subr.mxu0 0.0
    %165 = vmatpush1.xpose.msra.mxu0 %v134
    %166 = vmatprep.subr.mxu0 0.0
    %167 = vmatpush1.xpose.msra.mxu0 %v135
    %168 = vmatprep.subr.mxu0 0.0
    %169 = vmatpush1.xpose.msra.mxu0 0.0
    %170 = vmatprep.subr.mxu0 0.0
    %171 = vmatpush1.xpose.msra.mxu0 0.0
    %172 = vmatprep.subr.mxu0 0.0
    %173 = vmatpush1.xpose.msra.mxu0 0.0
    %174 = vmatprep.subr.mxu0 0.0
    %175 = vmatpush1.xpose.msra.mxu0 0.0
    %176 = vmatprep.subr.mxu0 0.0
    %177 = vmatpush1.xpose.msra.mxu0 0.0
    %178 = vmatprep.subr.mxu0 0.0
    %179 = vmatpush1.xpose.msra.mxu0 0.0
    %180 = vmatprep.subr.mxu0 0.0
    %181 = vmatpush1.xpose.msra.mxu0 0.0
    %182 = vmatprep.subr.mxu0 0.0
    %183 = vmatpush1.xpose.msra.mxu0 0.0
    %184 = vmatprep.subr.mxu0 0.0
    %185 = vmatpush1.xpose.msra.mxu0 0.0
    %186 = vmatprep.subr.mxu0 0.0
    %187 = vmatpush1.xpose.msra.mxu0 0.0
    %188 = vmatprep.subr.mxu0 0.0
    %189 = vmatpush1.xpose.msra.mxu0 0.0
    %190 = vmatprep.subr.mxu0 0.0
    %191 = vmatpush1.xpose.msra.mxu0 0.0
    %192 = vmatprep.subr.mxu0 0.0
    %193 = vmatpush1.xpose.msra.mxu0 0.0
    %194 = vmatprep.subr.mxu0 0.0
    %195 = vmatpush1.xpose.msra.mxu0 0.0
    %196 = vmatprep.subr.mxu0 0.0
    %197 = vmatpush1.xpose.msra.mxu0 0.0
    %198 = vmatprep.subr.mxu0 0.0
    %199 = vmatpush1.xpose.msra.mxu0 0.0
    %200 = vmatprep.mubr.f32.mxu0 0.0
    %201 = vmatmul.mubr.f32.gmra.mrb[0].mxu0 %v104
    %v202 = vpop.f32.mrb[0].mxu0
    %v203 = vadd.f32 0.0, %v202
    %v204 = vpop.f32.mrb[0].mxu0
    %205 = vmatprep.mubr.f32.mxu0 0.0
    %206 = vmatmul.mubr.f32.gmra.mrb[0].mxu0 %v105
    %v207 = vpop.f32.mrb[0].mxu0
    %v208 = vadd.f32 0.0, %v207
    %v209 = vpop.f32.mrb[0].mxu0
    %210 = vmatprep.mubr.f32.mxu0 0.0
    %211 = vmatmul.mubr.f32.gmra.mrb[0].mxu0 %v106
    %v212 = vpop.f32.mrb[0].mxu0
    %v213 = vadd.f32 0.0, %v212
    %v214 = vpop.f32.mrb[0].mxu0
    %215 = vmatprep.mubr.f32.mxu0 0.0
    %216 = vmatmul.mubr.f32.gmra.mrb[0].mxu0 %v107
    %v217 = vpop.f32.mrb[0].mxu0
    %v218 = vadd.f32 0.0, %v217
    %v219 = vpop.f32.mrb[0].mxu0
    %220 = vmatprep.mubr.f32.mxu0 0.0
    %221 = vmatmul.mubr.f32.gmra.mrb[0].mxu0 %v108
    %v222 = vpop.f32.mrb[0].mxu0
    %v223 = vadd.f32 0.0, %v222
    %v224 = vpop.f32.mrb[0].mxu0
    %225 = vmatprep.mubr.f32.mxu0 0.0
    %226 = vmatmul.mubr.f32.gmra.mrb[0].mxu0 %v109
    %v227 = vpop.f32.mrb[0].mxu0
    %v228 = vadd.f32 0.0, %v227
    %v229 = vpop.f32.mrb[0].mxu0
    %230 = vmatprep.mubr.f32.mxu0 0.0
    %231 = vmatmul.mubr.f32.gmra.mrb[0].mxu0 %v110
    %v232 = vpop.f32.mrb[0].mxu0
    %v233 = vadd.f32 0.0, %v232
    %v234 = vpop.f32.mrb[0].mxu0
    %235 = vmatprep.mubr.f32.mxu0 0.0
    %236 = vmatmul.mubr.f32.gmra.mrb[0].mxu0 %v111
    %v237 = vpop.f32.mrb[0].mxu0
    %v238 = vadd.f32 0.0, %v237
    %v239 = vpop.f32.mrb[0].mxu0
    %240 = vmatprep.mubr.f32.mxu0 0.0
    %241 = vmatmul.mubr.f32.gmra.mrb[0].mxu0 %v112
    %v242 = vpop.f32.mrb[0].mxu0
    %v243 = vadd.f32 0.0, %v242
    %v244 = vpop.f32.mrb[0].mxu0
    %245 = vmatprep.mubr.f32.mxu0 0.0
    %246 = vmatmul.mubr.f32.gmra.mrb[0].mxu0 %v113
    %v247 = vpop.f32.mrb[0].mxu0
    %v248 = vadd.f32 0.0, %v247
    %v249 = vpop.f32.mrb[0].mxu0
    %250 = vmatprep.mubr.f32.mxu0 0.0
    %251 = vmatmul.mubr.f32.gmra.mrb[0].mxu0 %v114
    %v252 = vpop.f32.mrb[0].mxu0
    %v253 = vadd.f32 0.0, %v252
    %v254 = vpop.f32.mrb[0].mxu0
    %255 = vmatprep.mubr.f32.mxu0 0.0
    %256 = vmatmul.mubr.f32.gmra.mrb[0].mxu0 %v115
    %v257 = vpop.f32.mrb[0].mxu0
    %v258 = vadd.f32 0.0, %v257
    %v259 = vpop.f32.mrb[0].mxu0
    %260 = vmatprep.mubr.f32.mxu0 0.0
    %261 = vmatmul.mubr.f32.gmra.mrb[0].mxu0 %v116
    %v262 = vpop.f32.mrb[0].mxu0
    %v263 = vadd.f32 0.0, %v262
    %v264 = vpop.f32.mrb[0].mxu0
    %265 = vmatprep.mubr.f32.mxu0 0.0
    %266 = vmatmul.mubr.f32.gmra.mrb[0].mxu0 %v117
    %v267 = vpop.f32.mrb[0].mxu0
    %v268 = vadd.f32 0.0, %v267
    %v269 = vpop.f32.mrb[0].mxu0
    %270 = vmatprep.mubr.f32.mxu0 0.0
    %271 = vmatmul.mubr.f32.gmra.mrb[0].mxu0 %v118
    %v272 = vpop.f32.mrb[0].mxu0
    %v273 = vadd.f32 0.0, %v272
    %v274 = vpop.f32.mrb[0].mxu0
    %275 = vmatprep.mubr.f32.mxu0 0.0
    %276 = vmatmul.mubr.f32.gmra.mrb[0].mxu0 %v119
    %v277 = vpop.f32.mrb[0].mxu0
    %v278 = vadd.f32 0.0, %v277
    %v279 = vpop.f32.mrb[0].mxu0
    %280 = vdwg.mxu0
    %s281 = smul.u32 0, 128
    %v282 = vlaneseq
    %v283 = vshrl.u32 %v282, 7
    %v284 = vadd.s32 %v283, 8
    %v285 = vadd.s32 %v283, 16
    %v286 = vadd.s32 %v283, 24
    %v287 = vadd.s32 %v283, 32
    %v288 = vadd.s32 %v283, 40
    %v289 = vadd.s32 %v283, 48
    %v290 = vadd.s32 %v283, 56
    %v291 = vadd.s32 %v283, 64
    %v292 = vadd.s32 %v283, 72
    %v293 = vadd.s32 %v283, 80
    %v294 = vadd.s32 %v283, 88
    %v295 = vadd.s32 %v283, 96
    %v296 = vadd.s32 %v283, 104
    %v297 = vadd.s32 %v283, 112
    %v298 = vadd.s32 %v283, 120
    %v299 = vstv %s281
    %v300 = vadd.s32 %v299, %v283
    %v301 = vadd.s32 %v299, %v284
    %v302 = vadd.s32 %v299, %v285
    %v303 = vadd.s32 %v299, %v286
    %v304 = vadd.s32 %v299, %v287
    %v305 = vadd.s32 %v299, %v288
    %v306 = vadd.s32 %v299, %v289
    %v307 = vadd.s32 %v299, %v290
    %v308 = vadd.s32 %v299, %v291
    %v309 = vadd.s32 %v299, %v292
    %v310 = vadd.s32 %v299, %v293
    %v311 = vadd.s32 %v299, %v294
    %v312 = vadd.s32 %v299, %v295
    %v313 = vadd.s32 %v299, %v296
    %v314 = vadd.s32 %v299, %v297
    %v315 = vadd.s32 %v299, %v298
    %s316 = smul.u32 0, 128
    %v317 = vlaneseq
    %v318 = vand.u32 %v317, 127
    %v319 = vstv %s316
    %v320 = vadd.s32 %v319, %v318
    %vm321 = vcmp.lt.s32.totalorder %v320, 8
    %vm322 = vcmp.ne.s32.totalorder %v300, %v320
    %vm323 = vcmp.ne.s32.totalorder %v301, %v320
    %vm324 = vcmp.ne.s32.totalorder %v302, %v320
    %vm325 = vcmp.ne.s32.totalorder %v303, %v320
    %vm326 = vcmp.ne.s32.totalorder %v304, %v320
    %vm327 = vcmp.ne.s32.totalorder %v305, %v320
    %vm328 = vcmp.ne.s32.totalorder %v306, %v320
    %vm329 = vcmp.ne.s32.totalorder %v307, %v320
    %vm330 = vcmp.ne.s32.totalorder %v308, %v320
    %vm331 = vcmp.ne.s32.totalorder %v309, %v320
    %vm332 = vcmp.ne.s32.totalorder %v310, %v320
    %vm333 = vcmp.ne.s32.totalorder %v311, %v320
    %vm334 = vcmp.ne.s32.totalorder %v312, %v320
    %vm335 = vcmp.ne.s32.totalorder %v313, %v320
    %vm336 = vcmp.ne.s32.totalorder %v314, %v320
    %vm337 = vcmp.ne.s32.totalorder %v315, %v320
    %vm338 = vmand %vm321, %vm322
    %vm339 = vmand %vm321, %vm323
    %vm340 = vmand %vm321, %vm324
    %vm341 = vmand %vm321, %vm325
    %vm342 = vmand %vm321, %vm326
    %vm343 = vmand %vm321, %vm327
    %vm344 = vmand %vm321, %vm328
    %vm345 = vmand %vm321, %vm329
    %vm346 = vmand %vm321, %vm330
    %vm347 = vmand %vm321, %vm331
    %vm348 = vmand %vm321, %vm332
    %vm349 = vmand %vm321, %vm333
    %vm350 = vmand %vm321, %vm334
    %vm351 = vmand %vm321, %vm335
    %vm352 = vmand %vm321, %vm336
    %vm353 = vmand %vm321, %vm337
    %v354 = vsel %vm338, %v203, -1e+30
    %v355 = vsel %vm339, %v208, -1e+30
    %v356 = vsel %vm340, %v213, -1e+30
    %v357 = vsel %vm341, %v218, -1e+30
    %v358 = vsel %vm342, %v223, -1e+30
    %v359 = vsel %vm343, %v228, -1e+30
    %v360 = vsel %vm344, %v233, -1e+30
    %v361 = vsel %vm345, %v238, -1e+30
    %v362 = vsel %vm346, %v243, -1e+30
    %v363 = vsel %vm347, %v248, -1e+30
    %v364 = vsel %vm348, %v253, -1e+30
    %v365 = vsel %vm349, %v258, -1e+30
    %v366 = vsel %vm350, %v263, -1e+30
    %v367 = vsel %vm351, %v268, -1e+30
    %v368 = vsel %vm352, %v273, -1e+30
    %v369 = vsel %vm353, %v278, -1e+30
    %v370 = vld [vmem:[#allocation2] sm:$0xff]
    %v371 = vld [vmem:[#allocation2 + $0x8] sm:$0xff]
    %v372 = vld [vmem:[#allocation2 + $0x10] sm:$0xff]
    %v373 = vld [vmem:[#allocation2 + $0x18] sm:$0xff]
    %v374 = vld [vmem:[#allocation2 + $0x20] sm:$0xff]
    %v375 = vld [vmem:[#allocation2 + $0x28] sm:$0xff]
    %v376 = vld [vmem:[#allocation2 + $0x30] sm:$0xff]
    %v377 = vld [vmem:[#allocation2 + $0x38] sm:$0xff]
    %v378 = vld [vmem:[#allocation2 + $0x40] sm:$0xff]
    %v379 = vld [vmem:[#allocation2 + $0x48] sm:$0xff]
    %v380 = vld [vmem:[#allocation2 + $0x50] sm:$0xff]
    %v381 = vld [vmem:[#allocation2 + $0x58] sm:$0xff]
    %v382 = vld [vmem:[#allocation2 + $0x60] sm:$0xff]
    %v383 = vld [vmem:[#allocation2 + $0x68] sm:$0xff]
    %v384 = vld [vmem:[#allocation2 + $0x70] sm:$0xff]
    %v385 = vld [vmem:[#allocation2 + $0x78] sm:$0xff]
    %386 = vmax.xlane.f32.xlu0 %v354
    %v387 = vpop.xlane.xlu0 %386
    %388 = vmax.xlane.f32.xlu0 %v355
    %v389 = vpop.xlane.xlu0 %388
    %390 = vmax.xlane.f32.xlu0 %v356
    %v391 = vpop.xlane.xlu0 %390
    %392 = vmax.xlane.f32.xlu0 %v357
    %v393 = vpop.xlane.xlu0 %392
    %394 = vmax.xlane.f32.xlu0 %v358
    %v395 = vpop.xlane.xlu0 %394
    %396 = vmax.xlane.f32.xlu0 %v359
    %v397 = vpop.xlane.xlu0 %396
    %398 = vmax.xlane.f32.xlu0 %v360
    %v399 = vpop.xlane.xlu0 %398
    %400 = vmax.xlane.f32.xlu0 %v361
    %v401 = vpop.xlane.xlu0 %400
    %402 = vmax.xlane.f32.xlu0 %v362
    %v403 = vpop.xlane.xlu0 %402
    %404 = vmax.xlane.f32.xlu0 %v363
    %v405 = vpop.xlane.xlu0 %404
    %406 = vmax.xlane.f32.xlu0 %v364
    %v407 = vpop.xlane.xlu0 %406
    %408 = vmax.xlane.f32.xlu0 %v365
    %v409 = vpop.xlane.xlu0 %408
    %410 = vmax.xlane.f32.xlu0 %v366
    %v411 = vpop.xlane.xlu0 %410
    %412 = vmax.xlane.f32.xlu0 %v367
    %v413 = vpop.xlane.xlu0 %412
    %414 = vmax.xlane.f32.xlu0 %v368
    %v415 = vpop.xlane.xlu0 %414
    %416 = vmax.xlane.f32.xlu0 %v369
    %v417 = vpop.xlane.xlu0 %416
    %v418 = vmax.f32 %v370, %v387
    %v419 = vmax.f32 %v371, %v389
    %v420 = vmax.f32 %v372, %v391
    %v421 = vmax.f32 %v373, %v393
    %v422 = vmax.f32 %v374, %v395
    %v423 = vmax.f32 %v375, %v397
    %v424 = vmax.f32 %v376, %v399
    %v425 = vmax.f32 %v377, %v401
    %v426 = vmax.f32 %v378, %v403
    %v427 = vmax.f32 %v379, %v405
    %v428 = vmax.f32 %v380, %v407
    %v429 = vmax.f32 %v381, %v409
    %v430 = vmax.f32 %v382, %v411
    %v431 = vmax.f32 %v383, %v413
    %v432 = vmax.f32 %v384, %v415
    %v433 = vmax.f32 %v385, %v417
    %v434 = vsub.f32 %v370, %v418
    %v435 = vsub.f32 %v371, %v419
    %v436 = vsub.f32 %v372, %v420
    %v437 = vsub.f32 %v373, %v421
    %v438 = vsub.f32 %v374, %v422
    %v439 = vsub.f32 %v375, %v423
    %v440 = vsub.f32 %v376, %v424
    %v441 = vsub.f32 %v377, %v425
    %v442 = vsub.f32 %v378, %v426
    %v443 = vsub.f32 %v379, %v427
    %v444 = vsub.f32 %v380, %v428
    %v445 = vsub.f32 %v381, %v429
    %v446 = vsub.f32 %v382, %v430
    %v447 = vsub.f32 %v383, %v431
    %v448 = vsub.f32 %v384, %v432
    %v449 = vsub.f32 %v385, %v433
    %v450 = vmul.f32 %v434, 1.442695
    %v451 = vpow.pop %v450
    %v452 = vmul.f32 %v435, 1.442695
    %v453 = vpow.pop %v452
    %v454 = vmul.f32 %v436, 1.442695
    %v455 = vpow.pop %v454
    %v456 = vmul.f32 %v437, 1.442695
    %v457 = vpow.pop %v456
    %v458 = vmul.f32 %v438, 1.442695
    %v459 = vpow.pop %v458
    %v460 = vmul.f32 %v439, 1.442695
    %v461 = vpow.pop %v460
    %v462 = vmul.f32 %v440, 1.442695
    %v463 = vpow.pop %v462
    %v464 = vmul.f32 %v441, 1.442695
    %v465 = vpow.pop %v464
    %v466 = vmul.f32 %v442, 1.442695
    %v467 = vpow.pop %v466
    %v468 = vmul.f32 %v443, 1.442695
    %v469 = vpow.pop %v468
    %v470 = vmul.f32 %v444, 1.442695
    %v471 = vpow.pop %v470
    %v472 = vmul.f32 %v445, 1.442695
    %v473 = vpow.pop %v472
    %v474 = vmul.f32 %v446, 1.442695
    %v475 = vpow.pop %v474
    %v476 = vmul.f32 %v447, 1.442695
    %v477 = vpow.pop %v476
    %v478 = vmul.f32 %v448, 1.442695
    %v479 = vpow.pop %v478
    %v480 = vmul.f32 %v449, 1.442695
    %v481 = vpow.pop %v480
    %v482 = vld [vmem:[#allocation3] sm:$0xff]
    %v483 = vld [vmem:[#allocation3 + $0x8] sm:$0xff]
    %v484 = vld [vmem:[#allocation3 + $0x10] sm:$0xff]
    %v485 = vld [vmem:[#allocation3 + $0x18] sm:$0xff]
    %v486 = vld [vmem:[#allocation3 + $0x20] sm:$0xff]
    %v487 = vld [vmem:[#allocation3 + $0x28] sm:$0xff]
    %v488 = vld [vmem:[#allocation3 + $0x30] sm:$0xff]
    %v489 = vld [vmem:[#allocation3 + $0x38] sm:$0xff]
    %v490 = vld [vmem:[#allocation3 + $0x40] sm:$0xff]
    %v491 = vld [vmem:[#allocation3 + $0x48] sm:$0xff]
    %v492 = vld [vmem:[#allocation3 + $0x50] sm:$0xff]
    %v493 = vld [vmem:[#allocation3 + $0x58] sm:$0xff]
    %v494 = vld [vmem:[#allocation3 + $0x60] sm:$0xff]
    %v495 = vld [vmem:[#allocation3 + $0x68] sm:$0xff]
    %v496 = vld [vmem:[#allocation3 + $0x70] sm:$0xff]
    %v497 = vld [vmem:[#allocation3 + $0x78] sm:$0xff]
    %v498 = vmul.f32 %v451, %v482
    %v499 = vmul.f32 %v453, %v483
    %v500 = vmul.f32 %v455, %v484
    %v501 = vmul.f32 %v457, %v485
    %v502 = vmul.f32 %v459, %v486
    %v503 = vmul.f32 %v461, %v487
    %v504 = vmul.f32 %v463, %v488
    %v505 = vmul.f32 %v465, %v489
    %v506 = vmul.f32 %v467, %v490
    %v507 = vmul.f32 %v469, %v491
    %v508 = vmul.f32 %v471, %v492
    %v509 = vmul.f32 %v473, %v493
    %v510 = vmul.f32 %v475, %v494
    %v511 = vmul.f32 %v477, %v495
    %v512 = vmul.f32 %v479, %v496
    %v513 = vmul.f32 %v481, %v497
    %515 = vset.pattern.permute.xlu0 0
    %516 = vperm.xlu0 %515, %v418
    %v517 = vpop.permute.xlu0 %516
    %520 = vset.pattern.permute.xlu0 0
    %521 = vperm.xlu0 %520, %v419
    %v522 = vpop.permute.xlu0 %521
    %525 = vset.pattern.permute.xlu0 0
    %526 = vperm.xlu0 %525, %v420
    %v527 = vpop.permute.xlu0 %526
    %530 = vset.pattern.permute.xlu0 0
    %531 = vperm.xlu0 %530, %v421
    %v532 = vpop.permute.xlu0 %531
    %535 = vset.pattern.permute.xlu0 0
    %536 = vperm.xlu0 %535, %v422
    %v537 = vpop.permute.xlu0 %536
    %540 = vset.pattern.permute.xlu0 0
    %541 = vperm.xlu0 %540, %v423
    %v542 = vpop.permute.xlu0 %541
    %545 = vset.pattern.permute.xlu0 0
    %546 = vperm.xlu0 %545, %v424
    %v547 = vpop.permute.xlu0 %546
    %550 = vset.pattern.permute.xlu0 0
    %551 = vperm.xlu0 %550, %v425
    %v552 = vpop.permute.xlu0 %551
    %555 = vset.pattern.permute.xlu0 0
    %556 = vperm.xlu0 %555, %v426
    %v557 = vpop.permute.xlu0 %556
    %560 = vset.pattern.permute.xlu0 0
    %561 = vperm.xlu0 %560, %v427
    %v562 = vpop.permute.xlu0 %561
    %565 = vset.pattern.permute.xlu0 0
    %566 = vperm.xlu0 %565, %v428
    %v567 = vpop.permute.xlu0 %566
    %570 = vset.pattern.permute.xlu0 0
    %571 = vperm.xlu0 %570, %v429
    %v572 = vpop.permute.xlu0 %571
    %575 = vset.pattern.permute.xlu0 0
    %576 = vperm.xlu0 %575, %v430
    %v577 = vpop.permute.xlu0 %576
    %580 = vset.pattern.permute.xlu0 0
    %581 = vperm.xlu0 %580, %v431
    %v582 = vpop.permute.xlu0 %581
    %585 = vset.pattern.permute.xlu0 0
    %586 = vperm.xlu0 %585, %v432
    %v587 = vpop.permute.xlu0 %586
    %590 = vset.pattern.permute.xlu0 0
    %591 = vperm.xlu0 %590, %v433
    %v592 = vpop.permute.xlu0 %591
    %v594 = vsub.f32 %v354, %v517
    %v595 = vsub.f32 %v355, %v522
    %v596 = vsub.f32 %v356, %v527
    %v597 = vsub.f32 %v357, %v532
    %v598 = vsub.f32 %v358, %v537
    %v599 = vsub.f32 %v359, %v542
    %v600 = vsub.f32 %v360, %v547
    %v601 = vsub.f32 %v361, %v552
    %v602 = vsub.f32 %v362, %v557
    %v603 = vsub.f32 %v363, %v562
    %v604 = vsub.f32 %v364, %v567
    %v605 = vsub.f32 %v365, %v572
    %v606 = vsub.f32 %v366, %v577
    %v607 = vsub.f32 %v367, %v582
    %v608 = vsub.f32 %v368, %v587
    %v609 = vsub.f32 %v369, %v592
    %v610 = vmul.f32 %v594, 1.442695
    %v611 = vpow.pop %v610
    %v612 = vmul.f32 %v595, 1.442695
    %v613 = vpow.pop %v612
    %v614 = vmul.f32 %v596, 1.442695
    %v615 = vpow.pop %v614
    %v616 = vmul.f32 %v597, 1.442695
    %v617 = vpow.pop %v616
    %v618 = vmul.f32 %v598, 1.442695
    %v619 = vpow.pop %v618
    %v620 = vmul.f32 %v599, 1.442695
    %v621 = vpow.pop %v620
    %v622 = vmul.f32 %v600, 1.442695
    %v623 = vpow.pop %v622
    %v624 = vmul.f32 %v601, 1.442695
    %v625 = vpow.pop %v624
    %v626 = vmul.f32 %v602, 1.442695
    %v627 = vpow.pop %v626
    %v628 = vmul.f32 %v603, 1.442695
    %v629 = vpow.pop %v628
    %v630 = vmul.f32 %v604, 1.442695
    %v631 = vpow.pop %v630
    %v632 = vmul.f32 %v605, 1.442695
    %v633 = vpow.pop %v632
    %v634 = vmul.f32 %v606, 1.442695
    %v635 = vpow.pop %v634
    %v636 = vmul.f32 %v607, 1.442695
    %v637 = vpow.pop %v636
    %v638 = vmul.f32 %v608, 1.442695
    %v639 = vpow.pop %v638
    %v640 = vmul.f32 %v609, 1.442695
    %v641 = vpow.pop %v640
    %642 = vadd.xlane.f32.xlu0 %v611
    %v643 = vpop.xlane.xlu0 %642
    %644 = vadd.xlane.f32.xlu0 %v613
    %v645 = vpop.xlane.xlu0 %644
    %646 = vadd.xlane.f32.xlu0 %v615
    %v647 = vpop.xlane.xlu0 %646
    %648 = vadd.xlane.f32.xlu0 %v617
    %v649 = vpop.xlane.xlu0 %648
    %650 = vadd.xlane.f32.xlu0 %v619
    %v651 = vpop.xlane.xlu0 %650
    %652 = vadd.xlane.f32.xlu0 %v621
    %v653 = vpop.xlane.xlu0 %652
    %654 = vadd.xlane.f32.xlu0 %v623
    %v655 = vpop.xlane.xlu0 %654
    %656 = vadd.xlane.f32.xlu0 %v625
    %v657 = vpop.xlane.xlu0 %656
    %658 = vadd.xlane.f32.xlu0 %v627
    %v659 = vpop.xlane.xlu0 %658
    %660 = vadd.xlane.f32.xlu0 %v629
    %v661 = vpop.xlane.xlu0 %660
    %662 = vadd.xlane.f32.xlu0 %v631
    %v663 = vpop.xlane.xlu0 %662
    %664 = vadd.xlane.f32.xlu0 %v633
    %v665 = vpop.xlane.xlu0 %664
    %666 = vadd.xlane.f32.xlu0 %v635
    %v667 = vpop.xlane.xlu0 %666
    %668 = vadd.xlane.f32.xlu0 %v637
    %v669 = vpop.xlane.xlu0 %668
    %670 = vadd.xlane.f32.xlu0 %v639
    %v671 = vpop.xlane.xlu0 %670
    %672 = vadd.xlane.f32.xlu0 %v641
    %v673 = vpop.xlane.xlu0 %672
    %v674 = vadd.f32 %v498, %v643
    %v675 = vadd.f32 %v499, %v645
    %v676 = vadd.f32 %v500, %v647
    %v677 = vadd.f32 %v501, %v649
    %v678 = vadd.f32 %v502, %v651
    %v679 = vadd.f32 %v503, %v653
    %v680 = vadd.f32 %v504, %v655
    %v681 = vadd.f32 %v505, %v657
    %v682 = vadd.f32 %v506, %v659
    %v683 = vadd.f32 %v507, %v661
    %v684 = vadd.f32 %v508, %v663
    %v685 = vadd.f32 %v509, %v665
    %v686 = vadd.f32 %v510, %v667
    %v687 = vadd.f32 %v511, %v669
    %v688 = vadd.f32 %v512, %v671
    %v689 = vadd.f32 %v513, %v673
    %vm690 = vcmask 7168
    %691 = vst.msk [vmem:[#allocation3] sm:$0xff] %vm690, %v674
    %692 = vst.msk [vmem:[#allocation3 + $0x8] sm:$0xff] %vm690, %v675
    %693 = vst.msk [vmem:[#allocation3 + $0x10] sm:$0xff] %vm690, %v676
    %694 = vst.msk [vmem:[#allocation3 + $0x18] sm:$0xff] %vm690, %v677
    %695 = vst.msk [vmem:[#allocation3 + $0x20] sm:$0xff] %vm690, %v678
    %696 = vst.msk [vmem:[#allocation3 + $0x28] sm:$0xff] %vm690, %v679
    %697 = vst.msk [vmem:[#allocation3 + $0x30] sm:$0xff] %vm690, %v680
    %698 = vst.msk [vmem:[#allocation3 + $0x38] sm:$0xff] %vm690, %v681
    %699 = vst.msk [vmem:[#allocation3 + $0x40] sm:$0xff] %vm690, %v682
    %700 = vst.msk [vmem:[#allocation3 + $0x48] sm:$0xff] %vm690, %v683
    %701 = vst.msk [vmem:[#allocation3 + $0x50] sm:$0xff] %vm690, %v684
    %702 = vst.msk [vmem:[#allocation3 + $0x58] sm:$0xff] %vm690, %v685
    %703 = vst.msk [vmem:[#allocation3 + $0x60] sm:$0xff] %vm690, %v686
    %704 = vst.msk [vmem:[#allocation3 + $0x68] sm:$0xff] %vm690, %v687
    %705 = vst.msk [vmem:[#allocation3 + $0x70] sm:$0xff] %vm690, %v688
    %706 = vst.msk [vmem:[#allocation3 + $0x78] sm:$0xff] %vm690, %v689
    %707 = vst.msk [vmem:[#allocation2] sm:$0xff] %vm690, %v418
    %708 = vst.msk [vmem:[#allocation2 + $0x8] sm:$0xff] %vm690, %v419
    %709 = vst.msk [vmem:[#allocation2 + $0x10] sm:$0xff] %vm690, %v420
    %710 = vst.msk [vmem:[#allocation2 + $0x18] sm:$0xff] %vm690, %v421
    %711 = vst.msk [vmem:[#allocation2 + $0x20] sm:$0xff] %vm690, %v422
    %712 = vst.msk [vmem:[#allocation2 + $0x28] sm:$0xff] %vm690, %v423
    %713 = vst.msk [vmem:[#allocation2 + $0x30] sm:$0xff] %vm690, %v424
    %714 = vst.msk [vmem:[#allocation2 + $0x38] sm:$0xff] %vm690, %v425
    %715 = vst.msk [vmem:[#allocation2 + $0x40] sm:$0xff] %vm690, %v426
    %716 = vst.msk [vmem:[#allocation2 + $0x48] sm:$0xff] %vm690, %v427
    %717 = vst.msk [vmem:[#allocation2 + $0x50] sm:$0xff] %vm690, %v428
    %718 = vst.msk [vmem:[#allocation2 + $0x58] sm:$0xff] %vm690, %v429
    %719 = vst.msk [vmem:[#allocation2 + $0x60] sm:$0xff] %vm690, %v430
    %720 = vst.msk [vmem:[#allocation2 + $0x68] sm:$0xff] %vm690, %v431
    %721 = vst.msk [vmem:[#allocation2 + $0x70] sm:$0xff] %vm690, %v432
    %722 = vst.msk [vmem:[#allocation2 + $0x78] sm:$0xff] %vm690, %v433
    %vm723 = vcmp.lt.s32.totalorder %v300, 8
    %vm724 = vcmp.lt.s32.totalorder %v301, 8
    %vm725 = vcmp.lt.s32.totalorder %v302, 8
    %vm726 = vcmp.lt.s32.totalorder %v303, 8
    %vm727 = vcmp.lt.s32.totalorder %v304, 8
    %vm728 = vcmp.lt.s32.totalorder %v305, 8
    %vm729 = vcmp.lt.s32.totalorder %v306, 8
    %vm730 = vcmp.lt.s32.totalorder %v307, 8
    %vm731 = vcmp.lt.s32.totalorder %v308, 8
    %vm732 = vcmp.lt.s32.totalorder %v309, 8
    %vm733 = vcmp.lt.s32.totalorder %v310, 8
    %vm734 = vcmp.lt.s32.totalorder %v311, 8
    %vm735 = vcmp.lt.s32.totalorder %v312, 8
    %vm736 = vcmp.lt.s32.totalorder %v313, 8
    %vm737 = vcmp.lt.s32.totalorder %v314, 8
    %vm738 = vcmp.lt.s32.totalorder %v315, 8
    %v739 = vld [vmem:[%s2] sm:$0xff]
    %v740 = vld [vmem:[%s2 + $0x8] sm:$0xff]
    %v741 = vld [vmem:[%s2 + $0x10] sm:$0xff]
    %v742 = vld [vmem:[%s2 + $0x18] sm:$0xff]
    %v743 = vld [vmem:[%s2 + $0x20] sm:$0xff]
    %v744 = vld [vmem:[%s2 + $0x28] sm:$0xff]
    %v745 = vld [vmem:[%s2 + $0x30] sm:$0xff]
    %v746 = vld [vmem:[%s2 + $0x38] sm:$0xff]
    %v747 = vld [vmem:[%s2 + $0x40] sm:$0xff]
    %v748 = vld [vmem:[%s2 + $0x48] sm:$0xff]
    %v749 = vld [vmem:[%s2 + $0x50] sm:$0xff]
    %v750 = vld [vmem:[%s2 + $0x58] sm:$0xff]
    %v751 = vld [vmem:[%s2 + $0x60] sm:$0xff]
    %v752 = vld [vmem:[%s2 + $0x68] sm:$0xff]
    %v753 = vld [vmem:[%s2 + $0x70] sm:$0xff]
    %v754 = vld [vmem:[%s2 + $0x78] sm:$0xff]
    %v755 = vld [vmem:[%s3] sm:$0x1]
    %756 = vset.pattern.permute.xlu0 0
    %757 = vperm.xlu0 %756, %v739
    %v758 = vpop.permute.xlu0 %757
    %759 = vset.pattern.permute.xlu0 0
    %760 = vperm.xlu0 %759, %v740
    %v761 = vpop.permute.xlu0 %760
    %762 = vset.pattern.permute.xlu0 0
    %763 = vperm.xlu0 %762, %v741
    %v764 = vpop.permute.xlu0 %763
    %765 = vset.pattern.permute.xlu0 0
    %766 = vperm.xlu0 %765, %v742
    %v767 = vpop.permute.xlu0 %766
    %768 = vset.pattern.permute.xlu0 0
    %769 = vperm.xlu0 %768, %v743
    %v770 = vpop.permute.xlu0 %769
    %771 = vset.pattern.permute.xlu0 0
    %772 = vperm.xlu0 %771, %v744
    %v773 = vpop.permute.xlu0 %772
    %774 = vset.pattern.permute.xlu0 0
    %775 = vperm.xlu0 %774, %v745
    %v776 = vpop.permute.xlu0 %775
    %777 = vset.pattern.permute.xlu0 0
    %778 = vperm.xlu0 %777, %v746
    %v779 = vpop.permute.xlu0 %778
    %780 = vset.pattern.permute.xlu0 0
    %781 = vperm.xlu0 %780, %v747
    %v782 = vpop.permute.xlu0 %781
    %783 = vset.pattern.permute.xlu0 0
    %784 = vperm.xlu0 %783, %v748
    %v785 = vpop.permute.xlu0 %784
    %786 = vset.pattern.permute.xlu0 0
    %787 = vperm.xlu0 %786, %v749
    %v788 = vpop.permute.xlu0 %787
    %789 = vset.pattern.permute.xlu0 0
    %790 = vperm.xlu0 %789, %v750
    %v791 = vpop.permute.xlu0 %790
    %792 = vset.pattern.permute.xlu0 0
    %793 = vperm.xlu0 %792, %v751
    %v794 = vpop.permute.xlu0 %793
    %795 = vset.pattern.permute.xlu0 0
    %796 = vperm.xlu0 %795, %v752
    %v797 = vpop.permute.xlu0 %796
    %798 = vset.pattern.permute.xlu0 0
    %799 = vperm.xlu0 %798, %v753
    %v800 = vpop.permute.xlu0 %799
    %801 = vset.pattern.permute.xlu0 0
    %802 = vperm.xlu0 %801, %v754
    %v803 = vpop.permute.xlu0 %802
    %v804 = vlaneseq
    %v805 = vshrl.u32 %v804, 7
    %v806 = vsub.s32 0, %v805
    %v807 = vrot.slane %v755, %v806
    %vm808 = vcmp.eq.s32.totalorder %v758, %v807
    %vm809 = vcmp.eq.s32.totalorder %v761, %v807
    %vm810 = vcmp.eq.s32.totalorder %v764, %v807
    %vm811 = vcmp.eq.s32.totalorder %v767, %v807
    %vm812 = vcmp.eq.s32.totalorder %v770, %v807
    %vm813 = vcmp.eq.s32.totalorder %v773, %v807
    %vm814 = vcmp.eq.s32.totalorder %v776, %v807
    %vm815 = vcmp.eq.s32.totalorder %v779, %v807
    %vm816 = vcmp.eq.s32.totalorder %v782, %v807
    %vm817 = vcmp.eq.s32.totalorder %v785, %v807
    %vm818 = vcmp.eq.s32.totalorder %v788, %v807
    %vm819 = vcmp.eq.s32.totalorder %v791, %v807
    %vm820 = vcmp.eq.s32.totalorder %v794, %v807
    %vm821 = vcmp.eq.s32.totalorder %v797, %v807
    %vm822 = vcmp.eq.s32.totalorder %v800, %v807
    %vm823 = vcmp.eq.s32.totalorder %v803, %v807
    %vm824 = vmand %vm808, %vm338
    %vm825 = vmand %vm809, %vm339
    %vm826 = vmand %vm810, %vm340
    %vm827 = vmand %vm811, %vm341
    %vm828 = vmand %vm812, %vm342
    %vm829 = vmand %vm813, %vm343
    %vm830 = vmand %vm814, %vm344
    %vm831 = vmand %vm815, %vm345
    %vm832 = vmand %vm816, %vm346
    %vm833 = vmand %vm817, %vm347
    %vm834 = vmand %vm818, %vm348
    %vm835 = vmand %vm819, %vm349
    %vm836 = vmand %vm820, %vm350
    %vm837 = vmand %vm821, %vm351
    %vm838 = vmand %vm822, %vm352
    %vm839 = vmand %vm823, %vm353
    %v840 = vsel %vm723, 1, 0
    %v841 = vsel %vm724, 1, 0
    %v842 = vsel %vm725, 1, 0
    %v843 = vsel %vm726, 1, 0
    %v844 = vsel %vm727, 1, 0
    %v845 = vsel %vm728, 1, 0
    %v846 = vsel %vm729, 1, 0
    %v847 = vsel %vm730, 1, 0
    %v848 = vsel %vm731, 1, 0
    %v849 = vsel %vm732, 1, 0
    %v850 = vsel %vm733, 1, 0
    %v851 = vsel %vm734, 1, 0
    %v852 = vsel %vm735, 1, 0
    %v853 = vsel %vm736, 1, 0
    %v854 = vsel %vm737, 1, 0
    %v855 = vsel %vm738, 1, 0
    %vm856 = vcmp.eq.s32.totalorder %v840, 1
    %vm857 = vcmp.eq.s32.totalorder %v841, 1
    %vm858 = vcmp.eq.s32.totalorder %v842, 1
    %vm859 = vcmp.eq.s32.totalorder %v843, 1
    %vm860 = vcmp.eq.s32.totalorder %v844, 1
    %vm861 = vcmp.eq.s32.totalorder %v845, 1
    %vm862 = vcmp.eq.s32.totalorder %v846, 1
    %vm863 = vcmp.eq.s32.totalorder %v847, 1
    %vm864 = vcmp.eq.s32.totalorder %v848, 1
    %vm865 = vcmp.eq.s32.totalorder %v849, 1
    %vm866 = vcmp.eq.s32.totalorder %v850, 1
    %vm867 = vcmp.eq.s32.totalorder %v851, 1
    %vm868 = vcmp.eq.s32.totalorder %v852, 1
    %vm869 = vcmp.eq.s32.totalorder %v853, 1
    %vm870 = vcmp.eq.s32.totalorder %v854, 1
    %vm871 = vcmp.eq.s32.totalorder %v855, 1
    %vm872 = vmand %vm824, %vm856
    %vm873 = vmand %vm825, %vm857
    %vm874 = vmand %vm826, %vm858
    %vm875 = vmand %vm827, %vm859
    %vm876 = vmand %vm828, %vm860
    %vm877 = vmand %vm829, %vm861
    %vm878 = vmand %vm830, %vm862
    %vm879 = vmand %vm831, %vm863
    %vm880 = vmand %vm832, %vm864
    %vm881 = vmand %vm833, %vm865
    %vm882 = vmand %vm834, %vm866
    %vm883 = vmand %vm835, %vm867
    %vm884 = vmand %vm836, %vm868
    %vm885 = vmand %vm837, %vm869
    %vm886 = vmand %vm838, %vm870
    %vm887 = vmand %vm839, %vm871
    %v888 = vld [vmem:[#allocation4] sm:$0xff]
    %v889 = vld [vmem:[#allocation4 + $0x8] sm:$0xff]
    %v890 = vld [vmem:[#allocation4 + $0x10] sm:$0xff]
    %v891 = vld [vmem:[#allocation4 + $0x18] sm:$0xff]
    %v892 = vld [vmem:[#allocation4 + $0x20] sm:$0xff]
    %v893 = vld [vmem:[#allocation4 + $0x28] sm:$0xff]
    %v894 = vld [vmem:[#allocation4 + $0x30] sm:$0xff]
    %v895 = vld [vmem:[#allocation4 + $0x38] sm:$0xff]
    %v896 = vld [vmem:[#allocation4 + $0x40] sm:$0xff]
    %v897 = vld [vmem:[#allocation4 + $0x48] sm:$0xff]
    %v898 = vld [vmem:[#allocation4 + $0x50] sm:$0xff]
    %v899 = vld [vmem:[#allocation4 + $0x58] sm:$0xff]
    %v900 = vld [vmem:[#allocation4 + $0x60] sm:$0xff]
    %v901 = vld [vmem:[#allocation4 + $0x68] sm:$0xff]
    %v902 = vld [vmem:[#allocation4 + $0x70] sm:$0xff]
    %v903 = vld [vmem:[#allocation4 + $0x78] sm:$0xff]
    %v904 = vsel %vm872, %v203, 0.0
    %v905 = vsel %vm873, %v208, 0.0
    %v906 = vsel %vm874, %v213, 0.0
    %v907 = vsel %vm875, %v218, 0.0
    %v908 = vsel %vm876, %v223, 0.0
    %v909 = vsel %vm877, %v228, 0.0
    %v910 = vsel %vm878, %v233, 0.0
    %v911 = vsel %vm879, %v238, 0.0
    %v912 = vsel %vm880, %v243, 0.0
    %v913 = vsel %vm881, %v248, 0.0
    %v914 = vsel %vm882, %v253, 0.0
    %v915 = vsel %vm883, %v258, 0.0
    %v916 = vsel %vm884, %v263, 0.0
    %v917 = vsel %vm885, %v268, 0.0
    %v918 = vsel %vm886, %v273, 0.0
    %v919 = vsel %vm887, %v278, 0.0
    %920 = vadd.xlane.f32.xlu0 %v904
    %v921 = vpop.xlane.xlu0 %920
    %922 = vadd.xlane.f32.xlu0 %v905
    %v923 = vpop.xlane.xlu0 %922
    %924 = vadd.xlane.f32.xlu0 %v906
    %v925 = vpop.xlane.xlu0 %924
    %926 = vadd.xlane.f32.xlu0 %v907
    %v927 = vpop.xlane.xlu0 %926
    %928 = vadd.xlane.f32.xlu0 %v908
    %v929 = vpop.xlane.xlu0 %928
    %930 = vadd.xlane.f32.xlu0 %v909
    %v931 = vpop.xlane.xlu0 %930
    %932 = vadd.xlane.f32.xlu0 %v910
    %v933 = vpop.xlane.xlu0 %932
    %934 = vadd.xlane.f32.xlu0 %v911
    %v935 = vpop.xlane.xlu0 %934
    %936 = vadd.xlane.f32.xlu0 %v912
    %v937 = vpop.xlane.xlu0 %936
    %938 = vadd.xlane.f32.xlu0 %v913
    %v939 = vpop.xlane.xlu0 %938
    %940 = vadd.xlane.f32.xlu0 %v914
    %v941 = vpop.xlane.xlu0 %940
    %942 = vadd.xlane.f32.xlu0 %v915
    %v943 = vpop.xlane.xlu0 %942
    %944 = vadd.xlane.f32.xlu0 %v916
    %v945 = vpop.xlane.xlu0 %944
    %946 = vadd.xlane.f32.xlu0 %v917
    %v947 = vpop.xlane.xlu0 %946
    %948 = vadd.xlane.f32.xlu0 %v918
    %v949 = vpop.xlane.xlu0 %948
    %950 = vadd.xlane.f32.xlu0 %v919
    %v951 = vpop.xlane.xlu0 %950
    %v952 = vadd.f32 %v888, %v921
    %v953 = vadd.f32 %v889, %v923
    %v954 = vadd.f32 %v890, %v925
    %v955 = vadd.f32 %v891, %v927
    %v956 = vadd.f32 %v892, %v929
    %v957 = vadd.f32 %v893, %v931
    %v958 = vadd.f32 %v894, %v933
    %v959 = vadd.f32 %v895, %v935
    %v960 = vadd.f32 %v896, %v937
    %v961 = vadd.f32 %v897, %v939
    %v962 = vadd.f32 %v898, %v941
    %v963 = vadd.f32 %v899, %v943
    %v964 = vadd.f32 %v900, %v945
    %v965 = vadd.f32 %v901, %v947
    %v966 = vadd.f32 %v902, %v949
    %v967 = vadd.f32 %v903, %v951
    %968 = vst.msk [vmem:[#allocation4] sm:$0xff] %vm690, %v952
    %969 = vst.msk [vmem:[#allocation4 + $0x8] sm:$0xff] %vm690, %v953
    %970 = vst.msk [vmem:[#allocation4 + $0x10] sm:$0xff] %vm690, %v954
    %971 = vst.msk [vmem:[#allocation4 + $0x18] sm:$0xff] %vm690, %v955
    %972 = vst.msk [vmem:[#allocation4 + $0x20] sm:$0xff] %vm690, %v956
    %973 = vst.msk [vmem:[#allocation4 + $0x28] sm:$0xff] %vm690, %v957
    %974 = vst.msk [vmem:[#allocation4 + $0x30] sm:$0xff] %vm690, %v958
    %975 = vst.msk [vmem:[#allocation4 + $0x38] sm:$0xff] %vm690, %v959
    %976 = vst.msk [vmem:[#allocation4 + $0x40] sm:$0xff] %vm690, %v960
    %977 = vst.msk [vmem:[#allocation4 + $0x48] sm:$0xff] %vm690, %v961
    %978 = vst.msk [vmem:[#allocation4 + $0x50] sm:$0xff] %vm690, %v962
    %979 = vst.msk [vmem:[#allocation4 + $0x58] sm:$0xff] %vm690, %v963
    %980 = vst.msk [vmem:[#allocation4 + $0x60] sm:$0xff] %vm690, %v964
    %981 = vst.msk [vmem:[#allocation4 + $0x68] sm:$0xff] %vm690, %v965
    %982 = vst.msk [vmem:[#allocation4 + $0x70] sm:$0xff] %vm690, %v966
    %983 = vst.msk [vmem:[#allocation4 + $0x78] sm:$0xff] %vm690, %v967
    %v984 = vld [vmem:[#allocation5] sm:$0xff]
    %v985 = vld [vmem:[#allocation5 + $0x8] sm:$0xff]
    %v986 = vld [vmem:[#allocation5 + $0x10] sm:$0xff]
    %v987 = vld [vmem:[#allocation5 + $0x18] sm:$0xff]
    %v988 = vld [vmem:[#allocation5 + $0x20] sm:$0xff]
    %v989 = vld [vmem:[#allocation5 + $0x28] sm:$0xff]
    %v990 = vld [vmem:[#allocation5 + $0x30] sm:$0xff]
    %v991 = vld [vmem:[#allocation5 + $0x38] sm:$0xff]
    %v992 = vld [vmem:[#allocation5 + $0x40] sm:$0xff]
    %v993 = vld [vmem:[#allocation5 + $0x48] sm:$0xff]
    %v994 = vld [vmem:[#allocation5 + $0x50] sm:$0xff]
    %v995 = vld [vmem:[#allocation5 + $0x58] sm:$0xff]
    %v996 = vld [vmem:[#allocation5 + $0x60] sm:$0xff]
    %v997 = vld [vmem:[#allocation5 + $0x68] sm:$0xff]
    %v998 = vld [vmem:[#allocation5 + $0x70] sm:$0xff]
    %v999 = vld [vmem:[#allocation5 + $0x78] sm:$0xff]
    %v1000 = vsel %vm872, 1, 0
    %v1001 = vsel %vm873, 1, 0
    %v1002 = vsel %vm874, 1, 0
    %v1003 = vsel %vm875, 1, 0
    %v1004 = vsel %vm876, 1, 0
    %v1005 = vsel %vm877, 1, 0
    %v1006 = vsel %vm878, 1, 0
    %v1007 = vsel %vm879, 1, 0
    %v1008 = vsel %vm880, 1, 0
    %v1009 = vsel %vm881, 1, 0
    %v1010 = vsel %vm882, 1, 0
    %v1011 = vsel %vm883, 1, 0
    %v1012 = vsel %vm884, 1, 0
    %v1013 = vsel %vm885, 1, 0
    %v1014 = vsel %vm886, 1, 0
    %v1015 = vsel %vm887, 1, 0
    %v1016 = vcvt.s32.f32 %v1000
    %v1017 = vcvt.s32.f32 %v1001
    %v1018 = vcvt.s32.f32 %v1002
    %v1019 = vcvt.s32.f32 %v1003
    %v1020 = vcvt.s32.f32 %v1004
    %v1021 = vcvt.s32.f32 %v1005
    %v1022 = vcvt.s32.f32 %v1006
    %v1023 = vcvt.s32.f32 %v1007
    %v1024 = vcvt.s32.f32 %v1008
    %v1025 = vcvt.s32.f32 %v1009
    %v1026 = vcvt.s32.f32 %v1010
    %v1027 = vcvt.s32.f32 %v1011
    %v1028 = vcvt.s32.f32 %v1012
    %v1029 = vcvt.s32.f32 %v1013
    %v1030 = vcvt.s32.f32 %v1014
    %v1031 = vcvt.s32.f32 %v1015
    %1032 = vadd.xlane.f32.xlu0 %v1016
    %v1033 = vpop.xlane.xlu0 %1032
    %1034 = vadd.xlane.f32.xlu0 %v1017
    %v1035 = vpop.xlane.xlu0 %1034
    %1036 = vadd.xlane.f32.xlu0 %v1018
    %v1037 = vpop.xlane.xlu0 %1036
    %1038 = vadd.xlane.f32.xlu0 %v1019
    %v1039 = vpop.xlane.xlu0 %1038
    %1040 = vadd.xlane.f32.xlu0 %v1020
    %v1041 = vpop.xlane.xlu0 %1040
    %1042 = vadd.xlane.f32.xlu0 %v1021
    %v1043 = vpop.xlane.xlu0 %1042
    %1044 = vadd.xlane.f32.xlu0 %v1022
    %v1045 = vpop.xlane.xlu0 %1044
    %1046 = vadd.xlane.f32.xlu0 %v1023
    %v1047 = vpop.xlane.xlu0 %1046
    %1048 = vadd.xlane.f32.xlu0 %v1024
    %v1049 = vpop.xlane.xlu0 %1048
    %1050 = vadd.xlane.f32.xlu0 %v1025
    %v1051 = vpop.xlane.xlu0 %1050
    %1052 = vadd.xlane.f32.xlu0 %v1026
    %v1053 = vpop.xlane.xlu0 %1052
    %1054 = vadd.xlane.f32.xlu0 %v1027
    %v1055 = vpop.xlane.xlu0 %1054
    %1056 = vadd.xlane.f32.xlu0 %v1028
    %v1057 = vpop.xlane.xlu0 %1056
    %1058 = vadd.xlane.f32.xlu0 %v1029
    %v1059 = vpop.xlane.xlu0 %1058
    %1060 = vadd.xlane.f32.xlu0 %v1030
    %v1061 = vpop.xlane.xlu0 %1060
    %1062 = vadd.xlane.f32.xlu0 %v1031
    %v1063 = vpop.xlane.xlu0 %1062
    %v1064 = vadd.f32 %v984, %v1033
    %v1065 = vadd.f32 %v985, %v1035
    %v1066 = vadd.f32 %v986, %v1037
    %v1067 = vadd.f32 %v987, %v1039
    %v1068 = vadd.f32 %v988, %v1041
    %v1069 = vadd.f32 %v989, %v1043
    %v1070 = vadd.f32 %v990, %v1045
    %v1071 = vadd.f32 %v991, %v1047
    %v1072 = vadd.f32 %v992, %v1049
    %v1073 = vadd.f32 %v993, %v1051
    %v1074 = vadd.f32 %v994, %v1053
    %v1075 = vadd.f32 %v995, %v1055
    %v1076 = vadd.f32 %v996, %v1057
    %v1077 = vadd.f32 %v997, %v1059
    %v1078 = vadd.f32 %v998, %v1061
    %v1079 = vadd.f32 %v999, %v1063
    %1080 = vst.msk [vmem:[#allocation5] sm:$0xff] %vm690, %v1064
    %1081 = vst.msk [vmem:[#allocation5 + $0x8] sm:$0xff] %vm690, %v1065
    %1082 = vst.msk [vmem:[#allocation5 + $0x10] sm:$0xff] %vm690, %v1066
    %1083 = vst.msk [vmem:[#allocation5 + $0x18] sm:$0xff] %vm690, %v1067
    %1084 = vst.msk [vmem:[#allocation5 + $0x20] sm:$0xff] %vm690, %v1068
    %1085 = vst.msk [vmem:[#allocation5 + $0x28] sm:$0xff] %vm690, %v1069
    %1086 = vst.msk [vmem:[#allocation5 + $0x30] sm:$0xff] %vm690, %v1070
    %1087 = vst.msk [vmem:[#allocation5 + $0x38] sm:$0xff] %vm690, %v1071
    %1088 = vst.msk [vmem:[#allocation5 + $0x40] sm:$0xff] %vm690, %v1072
    %1089 = vst.msk [vmem:[#allocation5 + $0x48] sm:$0xff] %vm690, %v1073
    %1090 = vst.msk [vmem:[#allocation5 + $0x50] sm:$0xff] %vm690, %v1074
    %1091 = vst.msk [vmem:[#allocation5 + $0x58] sm:$0xff] %vm690, %v1075
    %1092 = vst.msk [vmem:[#allocation5 + $0x60] sm:$0xff] %vm690, %v1076
    %1093 = vst.msk [vmem:[#allocation5 + $0x68] sm:$0xff] %vm690, %v1077
    %1094 = vst.msk [vmem:[#allocation5 + $0x70] sm:$0xff] %vm690, %v1078
    %1095 = vst.msk [vmem:[#allocation5 + $0x78] sm:$0xff] %vm690, %v1079
    // Predicated region
    $region26: #{tpu_custom_call.1} parent=1 // pred_check
      %p1096 = pneg %p35
    $region27: #{tpu_custom_call.1} parent=1 // pred_check_branch
      %1098 = sbr.rel (%p1096) target = $region29
    $region28: #{tpu_custom_call.1} parent=1 // pred_region
      %v1099 = vld [vmem:[#allocation2] sm:$0xff]
      %v1100 = vld [vmem:[#allocation2 + $0x8] sm:$0xff]
      %v1101 = vld [vmem:[#allocation2 + $0x10] sm:$0xff]
      %v1102 = vld [vmem:[#allocation2 + $0x18] sm:$0xff]
      %v1103 = vld [vmem:[#allocation2 + $0x20] sm:$0xff]
      %v1104 = vld [vmem:[#allocation2 + $0x28] sm:$0xff]
      %v1105 = vld [vmem:[#allocation2 + $0x30] sm:$0xff]
      %v1106 = vld [vmem:[#allocation2 + $0x38] sm:$0xff]
      %v1107 = vld [vmem:[#allocation2 + $0x40] sm:$0xff]
      %v1108 = vld [vmem:[#allocation2 + $0x48] sm:$0xff]
      %v1109 = vld [vmem:[#allocation2 + $0x50] sm:$0xff]
      %v1110 = vld [vmem:[#allocation2 + $0x58] sm:$0xff]
      %v1111 = vld [vmem:[#allocation2 + $0x60] sm:$0xff]
      %v1112 = vld [vmem:[#allocation2 + $0x68] sm:$0xff]
      %v1113 = vld [vmem:[#allocation2 + $0x70] sm:$0xff]
      %v1114 = vld [vmem:[#allocation2 + $0x78] sm:$0xff]
      %v1115 = vld [vmem:[#allocation3] sm:$0xff]
      %v1116 = vld [vmem:[#allocation3 + $0x8] sm:$0xff]
      %v1117 = vld [vmem:[#allocation3 + $0x10] sm:$0xff]
      %v1118 = vld [vmem:[#allocation3 + $0x18] sm:$0xff]
      %v1119 = vld [vmem:[#allocation3 + $0x20] sm:$0xff]
      %v1120 = vld [vmem:[#allocation3 + $0x28] sm:$0xff]
      %v1121 = vld [vmem:[#allocation3 + $0x30] sm:$0xff]
      %v1122 = vld [vmem:[#allocation3 + $0x38] sm:$0xff]
      %v1123 = vld [vmem:[#allocation3 + $0x40] sm:$0xff]
      %v1124 = vld [vmem:[#allocation3 + $0x48] sm:$0xff]
      %v1125 = vld [vmem:[#allocation3 + $0x50] sm:$0xff]
      %v1126 = vld [vmem:[#allocation3 + $0x58] sm:$0xff]
      %v1127 = vld [vmem:[#allocation3 + $0x60] sm:$0xff]
      %v1128 = vld [vmem:[#allocation3 + $0x68] sm:$0xff]
      %v1129 = vld [vmem:[#allocation3 + $0x70] sm:$0xff]
      %v1130 = vld [vmem:[#allocation3 + $0x78] sm:$0xff]
      %v1131 = vlog2.pop %v1115
      %v1132 = vmul.f32 %v1131, 0.6931472
      %v1133 = vlog2.pop %v1116
      %v1134 = vmul.f32 %v1133, 0.6931472
      %v1135 = vlog2.pop %v1117
      %v1136 = vmul.f32 %v1135, 0.6931472
      %v1137 = vlog2.pop %v1118
      %v1138 = vmul.f32 %v1137, 0.6931472
      %v1139 = vlog2.pop %v1119
      %v1140 = vmul.f32 %v1139, 0.6931472
      %v1141 = vlog2.pop %v1120
      %v1142 = vmul.f32 %v1141, 0.6931472
      %v1143 = vlog2.pop %v1121
      %v1144 = vmul.f32 %v1143, 0.6931472
      %v1145 = vlog2.pop %v1122
      %v1146 = vmul.f32 %v1145, 0.6931472
      %v1147 = vlog2.pop %v1123
      %v1148 = vmul.f32 %v1147, 0.6931472
      %v1149 = vlog2.pop %v1124
      %v1150 = vmul.f32 %v1149, 0.6931472
      %v1151 = vlog2.pop %v1125
      %v1152 = vmul.f32 %v1151, 0.6931472
      %v1153 = vlog2.pop %v1126
      %v1154 = vmul.f32 %v1153, 0.6931472
      %v1155 = vlog2.pop %v1127
      %v1156 = vmul.f32 %v1155, 0.6931472
      %v1157 = vlog2.pop %v1128
      %v1158 = vmul.f32 %v1157, 0.6931472
      %v1159 = vlog2.pop %v1129
      %v1160 = vmul.f32 %v1159, 0.6931472
      %v1161 = vlog2.pop %v1130
      %v1162 = vmul.f32 %v1161, 0.6931472
      %v1163 = vadd.f32 %v1099, %v1132
      %v1164 = vadd.f32 %v1100, %v1134
      %v1165 = vadd.f32 %v1101, %v1136
      %v1166 = vadd.f32 %v1102, %v1138
      %v1167 = vadd.f32 %v1103, %v1140
      %v1168 = vadd.f32 %v1104, %v1142
      %v1169 = vadd.f32 %v1105, %v1144
      %v1170 = vadd.f32 %v1106, %v1146
      %v1171 = vadd.f32 %v1107, %v1148
      %v1172 = vadd.f32 %v1108, %v1150
      %v1173 = vadd.f32 %v1109, %v1152
      %v1174 = vadd.f32 %v1110, %v1154
      %v1175 = vadd.f32 %v1111, %v1156
      %v1176 = vadd.f32 %v1112, %v1158
      %v1177 = vadd.f32 %v1113, %v1160
      %v1178 = vadd.f32 %v1114, %v1162
      %v1179 = vld [vmem:[#allocation5] sm:$0xff]
      %v1180 = vld [vmem:[#allocation5 + $0x8] sm:$0xff]
      %v1181 = vld [vmem:[#allocation5 + $0x10] sm:$0xff]
      %v1182 = vld [vmem:[#allocation5 + $0x18] sm:$0xff]
      %v1183 = vld [vmem:[#allocation5 + $0x20] sm:$0xff]
      %v1184 = vld [vmem:[#allocation5 + $0x28] sm:$0xff]
      %v1185 = vld [vmem:[#allocation5 + $0x30] sm:$0xff]
      %v1186 = vld [vmem:[#allocation5 + $0x38] sm:$0xff]
      %v1187 = vld [vmem:[#allocation5 + $0x40] sm:$0xff]
      %v1188 = vld [vmem:[#allocation5 + $0x48] sm:$0xff]
      %v1189 = vld [vmem:[#allocation5 + $0x50] sm:$0xff]
      %v1190 = vld [vmem:[#allocation5 + $0x58] sm:$0xff]
      %v1191 = vld [vmem:[#allocation5 + $0x60] sm:$0xff]
      %v1192 = vld [vmem:[#allocation5 + $0x68] sm:$0xff]
      %v1193 = vld [vmem:[#allocation5 + $0x70] sm:$0xff]
      %v1194 = vld [vmem:[#allocation5 + $0x78] sm:$0xff]
      %vm1195 = vcmp.gt.f32.partialorder %v1179, 0.0
      %vm1196 = vcmp.gt.f32.partialorder %v1180, 0.0
      %vm1197 = vcmp.gt.f32.partialorder %v1181, 0.0
      %vm1198 = vcmp.gt.f32.partialorder %v1182, 0.0
      %vm1199 = vcmp.gt.f32.partialorder %v1183, 0.0
      %vm1200 = vcmp.gt.f32.partialorder %v1184, 0.0
      %vm1201 = vcmp.gt.f32.partialorder %v1185, 0.0
      %vm1202 = vcmp.gt.f32.partialorder %v1186, 0.0
      %vm1203 = vcmp.gt.f32.partialorder %v1187, 0.0
      %vm1204 = vcmp.gt.f32.partialorder %v1188, 0.0
      %vm1205 = vcmp.gt.f32.partialorder %v1189, 0.0
      %vm1206 = vcmp.gt.f32.partialorder %v1190, 0.0
      %vm1207 = vcmp.gt.f32.partialorder %v1191, 0.0
      %vm1208 = vcmp.gt.f32.partialorder %v1192, 0.0
      %vm1209 = vcmp.gt.f32.partialorder %v1193, 0.0
      %vm1210 = vcmp.gt.f32.partialorder %v1194, 0.0
      %v1211 = vmul.f32 %v1179, %v1163
      %v1212 = vmul.f32 %v1180, %v1164
      %v1213 = vmul.f32 %v1181, %v1165
      %v1214 = vmul.f32 %v1182, %v1166
      %v1215 = vmul.f32 %v1183, %v1167
      %v1216 = vmul.f32 %v1184, %v1168
      %v1217 = vmul.f32 %v1185, %v1169
      %v1218 = vmul.f32 %v1186, %v1170
      %v1219 = vmul.f32 %v1187, %v1171
      %v1220 = vmul.f32 %v1188, %v1172
      %v1221 = vmul.f32 %v1189, %v1173
      %v1222 = vmul.f32 %v1190, %v1174
      %v1223 = vmul.f32 %v1191, %v1175
      %v1224 = vmul.f32 %v1192, %v1176
      %v1225 = vmul.f32 %v1193, %v1177
      %v1226 = vmul.f32 %v1194, %v1178
      %v1227 = vld [vmem:[#allocation4] sm:$0xff]
      %v1228 = vld [vmem:[#allocation4 + $0x8] sm:$0xff]
      %v1229 = vld [vmem:[#allocation4 + $0x10] sm:$0xff]
      %v1230 = vld [vmem:[#allocation4 + $0x18] sm:$0xff]
      %v1231 = vld [vmem:[#allocation4 + $0x20] sm:$0xff]
      %v1232 = vld [vmem:[#allocation4 + $0x28] sm:$0xff]
      %v1233 = vld [vmem:[#allocation4 + $0x30] sm:$0xff]
      %v1234 = vld [vmem:[#allocation4 + $0x38] sm:$0xff]
      %v1235 = vld [vmem:[#allocation4 + $0x40] sm:$0xff]
      %v1236 = vld [vmem:[#allocation4 + $0x48] sm:$0xff]
      %v1237 = vld [vmem:[#allocation4 + $0x50] sm:$0xff]
      %v1238 = vld [vmem:[#allocation4 + $0x58] sm:$0xff]
      %v1239 = vld [vmem:[#allocation4 + $0x60] sm:$0xff]
      %v1240 = vld [vmem:[#allocation4 + $0x68] sm:$0xff]
      %v1241 = vld [vmem:[#allocation4 + $0x70] sm:$0xff]
      %v1242 = vld [vmem:[#allocation4 + $0x78] sm:$0xff]
      %v1243 = vsub.f32 %v1211, %v1227
      %v1244 = vsub.f32 %v1212, %v1228
      %v1245 = vsub.f32 %v1213, %v1229
      %v1246 = vsub.f32 %v1214, %v1230
      %v1247 = vsub.f32 %v1215, %v1231
      %v1248 = vsub.f32 %v1216, %v1232
      %v1249 = vsub.f32 %v1217, %v1233
      %v1250 = vsub.f32 %v1218, %v1234
      %v1251 = vsub.f32 %v1219, %v1235
      %v1252 = vsub.f32 %v1220, %v1236
      %v1253 = vsub.f32 %v1221, %v1237
      %v1254 = vsub.f32 %v1222, %v1238
      %v1255 = vsub.f32 %v1223, %v1239
      %v1256 = vsub.f32 %v1224, %v1240
      %v1257 = vsub.f32 %v1225, %v1241
      %v1258 = vsub.f32 %v1226, %v1242
      %v1259 = vsel %vm1195, %v1243, 0.0
      %v1260 = vsel %vm1196, %v1244, 0.0
      %v1261 = vsel %vm1197, %v1245, 0.0
      %v1262 = vsel %vm1198, %v1246, 0.0
      %v1263 = vsel %vm1199, %v1247, 0.0
      %v1264 = vsel %vm1200, %v1248, 0.0
      %v1265 = vsel %vm1201, %v1249, 0.0
      %v1266 = vsel %vm1202, %v1250, 0.0
      %v1267 = vsel %vm1203, %v1251, 0.0
      %v1268 = vsel %vm1204, %v1252, 0.0
      %v1269 = vsel %vm1205, %v1253, 0.0
      %v1270 = vsel %vm1206, %v1254, 0.0
      %v1271 = vsel %vm1207, %v1255, 0.0
      %v1272 = vsel %vm1208, %v1256, 0.0
      %v1273 = vsel %vm1209, %v1257, 0.0
      %v1274 = vsel %vm1210, %v1258, 0.0
      %v1275 = vsel %vm690, %v1259, 0.0
      %v1276 = vsel %vm690, %v1260, 0.0
      %v1277 = vadd.f32 %v1275, %v1276
      %v1278 = vsel %vm690, %v1261, 0.0
      %v1279 = vadd.f32 %v1277, %v1278
      %v1280 = vsel %vm690, %v1262, 0.0
      %v1281 = vadd.f32 %v1279, %v1280
      %v1282 = vsel %vm690, %v1263, 0.0
      %v1283 = vadd.f32 %v1281, %v1282
      %v1284 = vsel %vm690, %v1264, 0.0
      %v1285 = vadd.f32 %v1283, %v1284
      %v1286 = vsel %vm690, %v1265, 0.0
      %v1287 = vadd.f32 %v1285, %v1286
      %v1288 = vsel %vm690, %v1266, 0.0
      %v1289 = vadd.f32 %v1287, %v1288
      %v1290 = vsel %vm690, %v1267, 0.0
      %v1291 = vadd.f32 %v1289, %v1290
      %v1292 = vsel %vm690, %v1268, 0.0
      %v1293 = vadd.f32 %v1291, %v1292
      %v1294 = vsel %vm690, %v1269, 0.0
      %v1295 = vadd.f32 %v1293, %v1294
      %v1296 = vsel %vm690, %v1270, 0.0
      %v1297 = vadd.f32 %v1295, %v1296
      %v1298 = vsel %vm690, %v1271, 0.0
      %v1299 = vadd.f32 %v1297, %v1298
      %v1300 = vsel %vm690, %v1272, 0.0
      %v1301 = vadd.f32 %v1299, %v1300
      %v1302 = vsel %vm690, %v1273, 0.0
      %v1303 = vadd.f32 %v1301, %v1302
      %v1304 = vsel %vm690, %v1274, 0.0
      %v1305 = vadd.f32 %v1303, %v1304
      %v1306 = vrot.slane %v1305, 4
      %v1307 = vadd.f32 %v1305, %v1306
      %v1308 = vrot.slane %v1307, 2
      %v1309 = vadd.f32 %v1307, %v1308
      %v1310 = vrot.slane %v1309, 1
      %v1311 = vadd.f32 %v1309, %v1310
      %v1312 = vsel %vm690, %v1179, 0.0
      %v1313 = vsel %vm690, %v1180, 0.0
      %v1314 = vadd.f32 %v1312, %v1313
      %v1315 = vsel %vm690, %v1181, 0.0
      %v1316 = vadd.f32 %v1314, %v1315
      %v1317 = vsel %vm690, %v1182, 0.0
      %v1318 = vadd.f32 %v1316, %v1317
      %v1319 = vsel %vm690, %v1183, 0.0
      %v1320 = vadd.f32 %v1318, %v1319
      %v1321 = vsel %vm690, %v1184, 0.0
      %v1322 = vadd.f32 %v1320, %v1321
      %v1323 = vsel %vm690, %v1185, 0.0
      %v1324 = vadd.f32 %v1322, %v1323
      %v1325 = vsel %vm690, %v1186, 0.0
      %v1326 = vadd.f32 %v1324, %v1325
      %v1327 = vsel %vm690, %v1187, 0.0
      %v1328 = vadd.f32 %v1326, %v1327
      %v1329 = vsel %vm690, %v1188, 0.0
      %v1330 = vadd.f32 %v1328, %v1329
      %v1331 = vsel %vm690, %v1189, 0.0
      %v1332 = vadd.f32 %v1330, %v1331
      %v1333 = vsel %vm690, %v1190, 0.0
      %v1334 = vadd.f32 %v1332, %v1333
      %v1335 = vsel %vm690, %v1191, 0.0
      %v1336 = vadd.f32 %v1334, %v1335
      %v1337 = vsel %vm690, %v1192, 0.0
      %v1338 = vadd.f32 %v1336, %v1337
      %v1339 = vsel %vm690, %v1193, 0.0
      %v1340 = vadd.f32 %v1338, %v1339
      %v1341 = vsel %vm690, %v1194, 0.0
      %v1342 = vadd.f32 %v1340, %v1341
      %v1343 = vrot.slane %v1342, 4
      %v1344 = vadd.f32 %v1342, %v1343
      %v1345 = vrot.slane %v1344, 2
      %v1346 = vadd.f32 %v1344, %v1345
      %v1347 = vrot.slane %v1346, 1
      %v1348 = vadd.f32 %v1346, %v1347
      %1350 = vset.pattern.permute.xlu0 0
      %1351 = vperm.xlu0 %1350, %v1311
      %v1352 = vpop.permute.xlu0 %1351
      %1354 = vst [vmem:[#allocation9] sm:$0x1] %v1352
      %1356 = vset.pattern.permute.xlu0 0
      %1357 = vperm.xlu0 %1356, %v1348
      %v1358 = vpop.permute.xlu0 %1357
      %1360 = vst [vmem:[#allocation10] sm:$0x1] %v1358
    $region29: #{tpu_custom_call.1} parent=1 // pred_fallthru
      _
    // Predicated region
    $region30: #{tpu_custom_call.1} parent=1 // pred_check
      _
    $region31: #{tpu_custom_call.1} parent=1 // pred_check_branch
      %1362 = sbr.rel (0) target = $region33
    $region32: #{tpu_custom_call.1} parent=1 // pred_region
      %s1364 = ssub.s32 16, 16
      %1365 = vsyncadd [#allocation8], %s1364
      %s1367 = sshll.u32 [#allocation9], 4
      %s1368 = int_to_ptr.vmem [resolvable:$true] %s1367
      %1370 = dma.vmem_to_hbm [thread:$0]  %s1368, 16, %s4, [#allocation8]
    $region33: #{tpu_custom_call.1} parent=1 // pred_fallthru
      _
    // Predicated region
    $region34: #{tpu_custom_call.1} parent=1 // pred_check
      _
    $region35: #{tpu_custom_call.1} parent=1 // pred_check_branch
      %1372 = sbr.rel (0) target = $region37
    $region36: #{tpu_custom_call.1} parent=1 // pred_region
      %s1374 = ssub.s32 16, 16
      %1375 = vsyncadd [#allocation11], %s1374
      %s1377 = sshll.u32 [#allocation10], 4
      %s1378 = int_to_ptr.vmem [resolvable:$true] %s1377
      %1380 = dma.vmem_to_hbm [thread:$0]  %s1378, 16, %s5, [#allocation11]
    $region37: #{tpu_custom_call.1} parent=1 // pred_fallthru
      _
    // Predicated region
    $region38: #{tpu_custom_call.1} parent=1 // pred_check
      _
    $region39: #{tpu_custom_call.1} parent=1 // pred_check_branch
      %1382 = sbr.rel (0) target = $region41
    $region40: #{tpu_custom_call.1} parent=1 // pred_region
      %1383 = dma.done [#allocation8], 16
    $region41: #{tpu_custom_call.1} parent=1 // pred_fallthru
      _
    // Predicated region
    $region42: #{tpu_custom_call.1} parent=1 // pred_check
      _
    $region43: #{tpu_custom_call.1} parent=1 // pred_check_branch
      %1385 = sbr.rel (0) target = $region45
    $region44: #{tpu_custom_call.1} parent=1 // pred_region
      %1386 = dma.done [#allocation11], 16
    $region45: #{tpu_custom_call.1} parent=1 // pred_fallthru
      _
    %1387 = vsyncpa [#allocation7], 1
    %1388 = vsyncpa [#allocation8], 1
    %1389 = vsyncpa [#allocation11], 1

</llo_original>
